<compile_context>
chip_gen: v7x
topology: tpu7x:2x2x1
jax: 0.10.0
libtpu: 0.0.40
codegen_flags: <defaults>
</compile_context>

<pallas_src>
import functools

import jax
import jax.numpy as jnp
from jax.experimental import pallas as pl
from jax.experimental.pallas import tpu as pltpu


STEM_C = 32      # stem conv channels (real B4 uses 48)
FEAT_C = 128     # backbone feature channels stand-in (real B4: 1792)
ADD_F = 8        # additional_features_size
K_RAW = 9 * 3    # 3x3 kernel taps x 3 input channels
K_PAD = 32       # zero-padded contraction dim (sublane friendly for bf16)
OUT_PAD = 128    # classifier logits padded 2 -> 128 for lane-dense stores
BATCH_ALIGN = 8  # sublane alignment for the head kernel batch dim


# -----------------------------------------------------------------------------
# Kernel 1: fused backbone (stem matmul -> SiLU -> 1x1 head matmul -> SiLU ->
#           spatial-mean accumulation).
# -----------------------------------------------------------------------------
def _backbone_kernel(p_ref, w1_ref, b1_ref, w2_ref, b2_ref, o_ref, acc_ref, *,
                     inv_hw):
    t = pl.program_id(1)

    @pl.when(t == 0)
    def _init():
        acc_ref[...] = jnp.zeros_like(acc_ref)

    p = p_ref[0]                                            # (tile_hw, K_PAD) bf16
    y1 = jnp.dot(p, w1_ref[...], preferred_element_type=jnp.float32)
    y1 = y1 + b1_ref[...]                                   # folded BN bias (f32)
    y1 = y1 * jax.nn.sigmoid(y1)                            # SiLU (EUP exp path)
    y2 = jnp.dot(y1.astype(w2_ref.dtype), w2_ref[...],
                 preferred_element_type=jnp.float32)
    y2 = y2 + b2_ref[...]
    y2 = y2 * jax.nn.sigmoid(y2)
    acc_ref[...] += jnp.sum(y2, axis=0, keepdims=True)      # per-sample row-sum

    @pl.when(t == pl.num_programs(1) - 1)
    def _finalize():
        o_ref[...] = (acc_ref[...] * inv_hw).astype(o_ref.dtype).reshape(o_ref.shape)


# -----------------------------------------------------------------------------
# Kernel 2: fused additional_stream MLP + (implicit) concat + classifier.
# Dropout layers are identity (eval-mode semantics).
# -----------------------------------------------------------------------------
def _head_kernel(base_ref, add_ref, aw1_ref, ab1_ref, aw2_ref, ab2_ref,
                 cw1a_ref, cw1b_ref, cb1_ref, cw2_ref, cb2_ref, o_ref):
    # additional_stream: Linear -> ReLU -> (Dropout) -> Linear -> ReLU
    a = jnp.dot(add_ref[...], aw1_ref[...], preferred_element_type=jnp.float32)
    a = jnp.maximum(a + ab1_ref[...], 0.0)
    a = jnp.dot(a.astype(aw2_ref.dtype), aw2_ref[...],
                preferred_element_type=jnp.float32)
    a = jnp.maximum(a + ab2_ref[...], 0.0)
    # concat(base, a) @ W1  ==  base @ W1[:FEAT_C] + a @ W1[FEAT_C:]
    h = (jnp.dot(base_ref[...], cw1a_ref[...], preferred_element_type=jnp.float32)
         + jnp.dot(a.astype(cw1b_ref.dtype), cw1b_ref[...],
                   preferred_element_type=jnp.float32)
         + cb1_ref[...])
    h = jnp.maximum(h, 0.0)
    out = jnp.dot(h.astype(cw2_ref.dtype), cw2_ref[...],
                  preferred_element_type=jnp.float32) + cb2_ref[...]
    o_ref[...] = out.astype(o_ref.dtype)


# -----------------------------------------------------------------------------
# Wrappers
# -----------------------------------------------------------------------------
def _choose_tile_hw(hw, cap=1024):
    """Largest spatial tile (<= cap) that divides hw; prefer multiples of 8."""
    if hw <= cap:
        return hw
    best = None
    for t in range(cap, 0, -1):
        if hw % t == 0:
            if t % 8 == 0:
                return t
            if best is None:
                best = t
    return best if best is not None else hw


def pallas_backbone(patches, w1, b1, w2, b2):
    """patches:(N,HW,Kp) bf16; w1:(Kp,Cs) bf16; w2:(Cs,Cf) bf16; b*: f32."""
    N, HW, Kp = patches.shape
    Cs = w1.shape[1]
    Cf = w2.shape[1]
    tile_hw = _choose_tile_hw(HW)
    num_t = HW // tile_hw

    cost = pl.CostEstimate(
        flops=2 * N * HW * (Kp * Cs + Cs * Cf),
        transcendentals=N * HW * (Cs + Cf),
        bytes_accessed=(patches.size * patches.dtype.itemsize
                        + w1.size * 2 + w2.size * 2 + (Cs + Cf) * 4
                        + N * Cf * 4),
    )

    out = pl.pallas_call(
        functools.partial(_backbone_kernel, inv_hw=1.0 / HW),
        out_shape=jax.ShapeDtypeStruct((N, 1, Cf), jnp.float32),
        grid=(N, num_t),
        in_specs=[
            pl.BlockSpec((1, tile_hw, Kp), lambda n, t: (n, t, 0)),
            pl.BlockSpec((Kp, Cs), lambda n, t: (0, 0)),
            pl.BlockSpec((1, Cs), lambda n, t: (0, 0)),
            pl.BlockSpec((Cs, Cf), lambda n, t: (0, 0)),
            pl.BlockSpec((1, Cf), lambda n, t: (0, 0)),
        ],
        out_specs=pl.BlockSpec((1, 1, Cf), lambda n, t: (n, 0, 0)),
        scratch_shapes=[pltpu.VMEM((1, Cf), jnp.float32)],
        compiler_params=pltpu.CompilerParams(
            dimension_semantics=("parallel", "arbitrary")),
        cost_estimate=cost,
    )(patches, w1, b1, w2, b2)
    return out.reshape(N, Cf)


def pallas_head(base, add, aw1, ab1, aw2, ab2, cw1a, cw1b, cb1, cw2, cb2):
    N = base.shape[0]
    n_out = cw2.shape[1]
    args = (base, add, aw1, ab1, aw2, ab2, cw1a, cw1b, cb1, cw2, cb2)

    def fs(arr):
        nd = arr.ndim
        return pl.BlockSpec(arr.shape, lambda i, _nd=nd: (0,) * _nd)

    cost = pl.CostEstimate(
        flops=2 * N * (aw1.shape[0] * aw1.shape[1] + aw2.shape[0] * aw2.shape[1]
                       + cw1a.shape[0] * cw1a.shape[1]
                       + cw1b.shape[0] * cw1b.shape[1]
                       + cw2.shape[0] * cw2.shape[1]),
        transcendentals=0,
        bytes_accessed=sum(a.size * a.dtype.itemsize for a in args)
        + N * n_out * 4,
    )
    return pl.pallas_call(
        _head_kernel,
        out_shape=jax.ShapeDtypeStruct((N, n_out), jnp.float32),
        grid=(1,),
        in_specs=[fs(a) for a in args],
        out_specs=pl.BlockSpec((N, n_out), lambda i: (0, 0)),
        cost_estimate=cost,
    )(*args)


# -----------------------------------------------------------------------------
# im2col for the 3x3 / stride-2 / pad-1 stem conv (wrapper side, bf16, K padded)
# -----------------------------------------------------------------------------
def im2col_3x3_s2(x_nhwc, k_pad):
    N, H, W, C = x_nhwc.shape
    Ho, Wo = H // 2, W // 2
    xp = jnp.pad(x_nhwc, ((0, 0), (1, 1), (1, 1), (0, 0)))
    taps = []
    for dy in range(3):
        for dx in range(3):
            taps.append(xp[:, dy:dy + 2 * Ho:2, dx:dx + 2 * Wo:2, :])
    p = jnp.concatenate(taps, axis=-1).reshape(N, Ho * Wo, 9 * C)
    if k_pad > 9 * C:
        p = jnp.pad(p, ((0, 0), (0, 0), (0, k_pad - 9 * C)))
    return p, (N, Ho, Wo)


def _pad_batch(x, n_pad):
    n = x.shape[0]
    if n == n_pad:
        return x
    pads = ((0, n_pad - n),) + ((0, 0),) * (x.ndim - 1)
    return jnp.pad(x, pads)


# -----------------------------------------------------------------------------
# Deterministic parameter init (synthetic; shapes follow the module structure)
# -----------------------------------------------------------------------------
def init_params(key):
    ks = jax.random.split(key, 16)
    p = {}
    # backbone stem: conv 3x3 s2 (3 -> STEM_C) + folded BN
    p["stem_w"] = 0.1 * jax.random.normal(ks[0], (3, 3, 3, STEM_C), jnp.float32)
    p["stem_scale"] = 1.0 + 0.01 * jax.random.normal(ks[1], (STEM_C,), jnp.float32)
    p["stem_bias"] = 0.01 * jax.random.normal(ks[2], (STEM_C,), jnp.float32)
    # backbone head: 1x1 conv (STEM_C -> FEAT_C) + folded BN
    p["head_w"] = 0.1 * jax.random.normal(ks[3], (STEM_C, FEAT_C), jnp.float32)
    p["head_scale"] = 1.0 + 0.01 * jax.random.normal(ks[4], (FEAT_C,), jnp.float32)
    p["head_bias"] = 0.01 * jax.random.normal(ks[5], (FEAT_C,), jnp.float32)
    # additional_stream: Linear(ADD_F,256) ReLU Dropout Linear(256,128) ReLU
    p["add_w1"] = 0.1 * jax.random.normal(ks[6], (ADD_F, 256), jnp.float32)
    p["add_b1"] = 0.01 * jax.random.normal(ks[7], (256,), jnp.float32)
    p["add_w2"] = 0.1 * jax.random.normal(ks[8], (256, 128), jnp.float32)
    p["add_b2"] = 0.01 * jax.random.normal(ks[9], (128,), jnp.float32)
    # combined_classifier: Dropout Linear(FEAT_C+128,512) ReLU Dropout Linear(512,2)
    p["cls_w1"] = 0.1 * jax.random.normal(ks[10], (FEAT_C + 128, 512), jnp.float32)
    p["cls_b1"] = 0.01 * jax.random.normal(ks[11], (512,), jnp.float32)
    p["cls_w2"] = 0.1 * jax.random.normal(ks[12], (512, 2), jnp.float32)
    p["cls_b2"] = 0.01 * jax.random.normal(ks[13], (2,), jnp.float32)
    return p


# -----------------------------------------------------------------------------
# Forward pass (mirrors CombinedEfficientNet.forward, eval-mode dropout == id)
# -----------------------------------------------------------------------------
def combined_efficientnet_forward(params, images_nchw, additional_features):
    bf16 = jnp.bfloat16
    N = images_nchw.shape[0]

    # ---- base_model.features(images).mean(dim=[2,3])  (single fused kernel) ----
    x = jnp.transpose(images_nchw, (0, 2, 3, 1))             # NCHW -> NHWC
    patches, _ = im2col_3x3_s2(x, K_PAD)
    patches = patches.astype(bf16)
    # fold BN scale into the conv weight columns (wrapper side, tiny)
    stem_w = params["stem_w"].reshape(K_RAW, STEM_C) * params["stem_scale"][None, :]
    stem_w = jnp.pad(stem_w, ((0, K_PAD - K_RAW), (0, 0))).astype(bf16)
    head_w = (params["head_w"] * params["head_scale"][None, :]).astype(bf16)
    base_output = pallas_backbone(
        patches, stem_w, params["stem_bias"].reshape(1, STEM_C),
        head_w, params["head_bias"].reshape(1, FEAT_C))       # (N, FEAT_C) f32

    # ---- additional_stream + concat + combined_classifier (single fused kernel) ----
    # Batch padded to a multiple of 8 so stores/loads are sublane-dense; padded
    # rows are garbage-but-harmless and sliced off below.
    n_pad = max(BATCH_ALIGN, ((N + BATCH_ALIGN - 1) // BATCH_ALIGN) * BATCH_ALIGN)
    base_p = _pad_batch(base_output.astype(bf16), n_pad)
    add_p = _pad_batch(additional_features.astype(bf16), n_pad)

    cw1a = params["cls_w1"][:FEAT_C].astype(bf16)
    cw1b = params["cls_w1"][FEAT_C:].astype(bf16)
    cw2 = jnp.pad(params["cls_w2"], ((0, 0), (0, OUT_PAD - 2))).astype(bf16)
    cb2 = jnp.pad(params["cls_b2"], (0, OUT_PAD - 2)).reshape(1, OUT_PAD)
    logits_padded = pallas_head(
        base_p, add_p,
        params["add_w1"].astype(bf16), params["add_b1"].reshape(1, 256),
        params["add_w2"].astype(bf16), params["add_b2"].reshape(1, 128),
        cw1a, cw1b, params["cls_b1"].reshape(1, 512),
        cw2, cb2)                                             # (n_pad, OUT_PAD)
    return logits_padded[:N, :2]


if __name__ == "__main__":
    key = jax.random.PRNGKey(0)
    pkey, ikey, akey = jax.random.split(key, 3)
    params = init_params(pkey)

    images = jax.random.normal(ikey, (2, 3, 32, 32), jnp.float32)   # NCHW like PyTorch
    additional_features = jax.random.normal(akey, (2, ADD_F), jnp.float32)

    fwd = jax.jit(combined_efficientnet_forward)
    out = jax.block_until_ready(fwd(params, images, additional_features))
    assert out.shape == (2, 2) and out.dtype == jnp.float32
    print("KERNEL_OK")
</pallas_src>

<mosaic_0001>
module attributes {stable_mosaic.version = 11 : i64} {
  func.func @_backbone_kernel(%arg0: i32, %arg1: i32, %arg2: memref<1x256x32xbf16, #tpu.memory_space<vmem>>, %arg3: memref<32x32xbf16, #tpu.memory_space<vmem>>, %arg4: memref<1x32xf32, #tpu.memory_space<vmem>>, %arg5: memref<32x128xbf16, #tpu.memory_space<vmem>>, %arg6: memref<1x128xf32, #tpu.memory_space<vmem>>, %arg7: memref<1x1x128xf32, #tpu.memory_space<vmem>>, %arg8: memref<1x128xf32, #tpu.memory_space<vmem>>) attributes {dimension_semantics = [#tpu.dimension_semantics<parallel>, #tpu.dimension_semantics<arbitrary>], iteration_bounds = array<i64: 2, 1>, scalar_prefetch = 0 : i64, scratch_operands = 1 : i64, tpu.core_type = #tpu.core_type<tc>, window_params = [{transform_indices = @transform_0, window_bounds = array<i64: 1, 256, 32>}, {pipeline_mode = #tpu.pipeline_mode<synchronous>, transform_indices = @transform_1, window_bounds = array<i64: 32, 32>}, {pipeline_mode = #tpu.pipeline_mode<synchronous>, transform_indices = @transform_2, window_bounds = array<i64: 1, 32>}, {pipeline_mode = #tpu.pipeline_mode<synchronous>, transform_indices = @transform_3, window_bounds = array<i64: 32, 128>}, {pipeline_mode = #tpu.pipeline_mode<synchronous>, transform_indices = @transform_4, window_bounds = array<i64: 1, 128>}, {transform_indices = @transform_5, window_bounds = array<i64: 1, 1, 128>}]} {
    %c0_i32 = arith.constant 0 : i32
    %0 = arith.cmpi eq, %arg1, %c0_i32 : i32
    %1 = arith.extui %0 : i1 to i32
    %c0_i32_0 = arith.constant 0 : i32
    %2 = arith.cmpi ne, %1, %c0_i32_0 : i32
    scf.if %2 {
      %cst_21 = arith.constant 0.000000e+00 : f32
      %36 = vector.broadcast %cst_21 : f32 to vector<1x128xf32>
      %c0_22 = arith.constant 0 : index
      %c0_23 = arith.constant 0 : index
      %37 = vector.load %arg8[%c0_22, %c0_23] : memref<1x128xf32, #tpu.memory_space<vmem>>, vector<1x128xf32>
      tpu.vector_store %arg8[%c0_22, %c0_23], %36 {strides = array<i32>} : memref<1x128xf32, #tpu.memory_space<vmem>>, vector<1x128xf32>,
    } else {
    }
    %c0 = arith.constant 0 : index
    %c0_1 = arith.constant 0 : index
    %c0_2 = arith.constant 0 : index
    %3 = vector.load %arg2[%c0, %c0_1, %c0_2] : memref<1x256x32xbf16, #tpu.memory_space<vmem>>, vector<1x256x32xbf16>
    %4 = vector.shape_cast %3 : vector<1x256x32xbf16> to vector<256x32xbf16>
    %c0_3 = arith.constant 0 : index
    %c0_4 = arith.constant 0 : index
    %5 = vector.load %arg3[%c0_3, %c0_4] : memref<32x32xbf16, #tpu.memory_space<vmem>>, vector<32x32xbf16>
    %cst = arith.constant dense<0.000000e+00> : vector<256x32xf32>
    %6 = tpu.matmul %4, %5, %cst {dimension_numbers = #tpu.dot_dimension_numbers<[1], [0], [0], [1], [0, 0, 1, 1], [], []>} : vector<256x32xbf16>, vector<32x32xbf16>, vector<256x32xf32> -> vector<256x32xf32>
    %c0_5 = arith.constant 0 : index
    %c0_6 = arith.constant 0 : index
    %7 = vector.load %arg4[%c0_5, %c0_6] : memref<1x32xf32, #tpu.memory_space<vmem>>, vector<1x32xf32>
    %8 = vector.broadcast %7 : vector<1x32xf32> to vector<256x32xf32>
    %9 = arith.addf %6, %8 : vector<256x32xf32>
    %10 = arith.negf %9 : vector<256x32xf32>
    %11 = math.exp %10 : vector<256x32xf32>
    %cst_7 = arith.constant 1.000000e+00 : f32
    %12 = vector.broadcast %cst_7 : f32 to vector<256x32xf32>
    %13 = arith.addf %12, %11 : vector<256x32xf32>
    %14 = arith.divf %12, %13 : vector<256x32xf32>
    %15 = arith.mulf %9, %14 : vector<256x32xf32>
    %16 = arith.truncf %15 : vector<256x32xf32> to vector<256x32xbf16>
    %c0_8 = arith.constant 0 : index
    %c0_9 = arith.constant 0 : index
    %17 = vector.load %arg5[%c0_8, %c0_9] : memref<32x128xbf16, #tpu.memory_space<vmem>>, vector<32x128xbf16>
    %cst_10 = arith.constant dense<0.000000e+00> : vector<256x128xf32>
    %18 = tpu.matmul %16, %17, %cst_10 {dimension_numbers = #tpu.dot_dimension_numbers<[1], [0], [0], [1], [0, 0, 1, 1], [], []>} : vector<256x32xbf16>, vector<32x128xbf16>, vector<256x128xf32> -> vector<256x128xf32>
    %c0_11 = arith.constant 0 : index
    %c0_12 = arith.constant 0 : index
    %19 = vector.load %arg6[%c0_11, %c0_12] : memref<1x128xf32, #tpu.memory_space<vmem>>, vector<1x128xf32>
    %20 = vector.broadcast %19 : vector<1x128xf32> to vector<256x128xf32>
    %21 = arith.addf %18, %20 : vector<256x128xf32>
    %22 = arith.negf %21 : vector<256x128xf32>
    %23 = math.exp %22 : vector<256x128xf32>
    %cst_13 = arith.constant 1.000000e+00 : f32
    %24 = vector.broadcast %cst_13 : f32 to vector<256x128xf32>
    %25 = arith.addf %24, %23 : vector<256x128xf32>
    %26 = arith.divf %24, %25 : vector<256x128xf32>
    %27 = arith.mulf %21, %26 : vector<256x128xf32>
    %c0_14 = arith.constant 0 : index
    %c0_15 = arith.constant 0 : index
    %28 = vector.load %arg8[%c0_14, %c0_15] : memref<1x128xf32, #tpu.memory_space<vmem>>, vector<1x128xf32>
    %cst_16 = arith.constant dense<0.000000e+00> : vector<128xf32>
    %29 = vector.multi_reduction <add>, %27, %cst_16 [0] : vector<256x128xf32> to vector<128xf32>
    %30 = vector.shape_cast %29 : vector<128xf32> to vector<1x128xf32>
    %31 = arith.addf %28, %30 : vector<1x128xf32>
    %c0_17 = arith.constant 0 : index
    %c0_18 = arith.constant 0 : index
    %32 = vector.load %arg8[%c0_17, %c0_18] : memref<1x128xf32, #tpu.memory_space<vmem>>, vector<1x128xf32>
    tpu.vector_store %arg8[%c0_17, %c0_18], %31 {strides = array<i32>} : memref<1x128xf32, #tpu.memory_space<vmem>>, vector<1x128xf32>,
    %c0_i32_19 = arith.constant 0 : i32
    %33 = arith.cmpi eq, %arg1, %c0_i32_19 : i32
    %34 = arith.extui %33 : i1 to i32
    %c0_i32_20 = arith.constant 0 : i32
    %35 = arith.cmpi ne, %34, %c0_i32_20 : i32
    scf.if %35 {
      %c0_21 = arith.constant 0 : index
      %c0_22 = arith.constant 0 : index
      %36 = vector.load %arg8[%c0_21, %c0_22] : memref<1x128xf32, #tpu.memory_space<vmem>>, vector<1x128xf32>
      %cst_23 = arith.constant 3.906250e-03 : f32
      %37 = vector.broadcast %cst_23 : f32 to vector<1x128xf32>
      %38 = arith.mulf %36, %37 : vector<1x128xf32>
      %39 = vector.shape_cast %38 : vector<1x128xf32> to vector<1x1x128xf32>
      %c0_24 = arith.constant 0 : index
      %c0_25 = arith.constant 0 : index
      %c0_26 = arith.constant 0 : index
      %40 = vector.load %arg7[%c0_24, %c0_25, %c0_26] : memref<1x1x128xf32, #tpu.memory_space<vmem>>, vector<1x1x128xf32>
      tpu.vector_store %arg7[%c0_24, %c0_25, %c0_26], %39 {strides = array<i32>} : memref<1x1x128xf32, #tpu.memory_space<vmem>>, vector<1x1x128xf32>,
    } else {
    }
    return
  }
  func.func @transform_0(%arg0: i32, %arg1: i32) -> (i32, i32, i32) {
    %c0_i32 = arith.constant 0 : i32
    %c0_i32_0 = arith.constant 0 : i32
    return %arg0, %arg1, %c0_i32 : i32, i32, i32
  }
  func.func @transform_1(%arg0: i32, %arg1: i32) -> (i32, i32) {
    %c0_i32 = arith.constant 0 : i32
    %c0_i32_0 = arith.constant 0 : i32
    %c0_i32_1 = arith.constant 0 : i32
    return %c0_i32, %c0_i32_0 : i32, i32
  }
  func.func @transform_2(%arg0: i32, %arg1: i32) -> (i32, i32) {
    %c0_i32 = arith.constant 0 : i32
    %c0_i32_0 = arith.constant 0 : i32
    %c0_i32_1 = arith.constant 0 : i32
    return %c0_i32, %c0_i32_0 : i32, i32
  }
  func.func @transform_3(%arg0: i32, %arg1: i32) -> (i32, i32) {
    %c0_i32 = arith.constant 0 : i32
    %c0_i32_0 = arith.constant 0 : i32
    %c0_i32_1 = arith.constant 0 : i32
    return %c0_i32, %c0_i32_0 : i32, i32
  }
  func.func @transform_4(%arg0: i32, %arg1: i32) -> (i32, i32) {
    %c0_i32 = arith.constant 0 : i32
    %c0_i32_0 = arith.constant 0 : i32
    %c0_i32_1 = arith.constant 0 : i32
    return %c0_i32, %c0_i32_0 : i32, i32
  }
  func.func @transform_5(%arg0: i32, %arg1: i32) -> (i32, i32, i32) {
    %c0_i32 = arith.constant 0 : i32
    %c0_i32_0 = arith.constant 0 : i32
    %c0_i32_1 = arith.constant 0 : i32
    return %arg0, %c0_i32, %c0_i32_0 : i32, i32, i32
  }
}

module attributes {stable_mosaic.version = 11 : i64} {
  func.func @_head_kernel(%arg0: i32, %arg1: memref<8x128xbf16, #tpu.memory_space<vmem>>, %arg2: memref<8x8xbf16, #tpu.memory_space<vmem>>, %arg3: memref<8x256xbf16, #tpu.memory_space<vmem>>, %arg4: memref<1x256xf32, #tpu.memory_space<vmem>>, %arg5: memref<256x128xbf16, #tpu.memory_space<vmem>>, %arg6: memref<1x128xf32, #tpu.memory_space<vmem>>, %arg7: memref<128x512xbf16, #tpu.memory_space<vmem>>, %arg8: memref<128x512xbf16, #tpu.memory_space<vmem>>, %arg9: memref<1x512xf32, #tpu.memory_space<vmem>>, %arg10: memref<512x128xbf16, #tpu.memory_space<vmem>>, %arg11: memref<1x128xf32, #tpu.memory_space<vmem>>, %arg12: memref<8x128xf32, #tpu.memory_space<vmem>>) attributes {dimension_semantics = [#tpu.dimension_semantics<arbitrary>], iteration_bounds = array<i64: 1>, scalar_prefetch = 0 : i64, scratch_operands = 0 : i64, tpu.core_type = #tpu.core_type<tc>, window_params = [{pipeline_mode = #tpu.pipeline_mode<synchronous>, transform_indices = @transform_0, window_bounds = array<i64: 8, 128>}, {pipeline_mode = #tpu.pipeline_mode<synchronous>, transform_indices = @transform_1, window_bounds = array<i64: 8, 8>}, {pipeline_mode = #tpu.pipeline_mode<synchronous>, transform_indices = @transform_2, window_bounds = array<i64: 8, 256>}, {pipeline_mode = #tpu.pipeline_mode<synchronous>, transform_indices = @transform_3, window_bounds = array<i64: 1, 256>}, {pipeline_mode = #tpu.pipeline_mode<synchronous>, transform_indices = @transform_4, window_bounds = array<i64: 256, 128>}, {pipeline_mode = #tpu.pipeline_mode<synchronous>, transform_indices = @transform_5, window_bounds = array<i64: 1, 128>}, {pipeline_mode = #tpu.pipeline_mode<synchronous>, transform_indices = @transform_6, window_bounds = array<i64: 128, 512>}, {pipeline_mode = #tpu.pipeline_mode<synchronous>, transform_indices = @transform_7, window_bounds = array<i64: 128, 512>}, {pipeline_mode = #tpu.pipeline_mode<synchronous>, transform_indices = @transform_8, window_bounds = array<i64: 1, 512>}, {pipeline_mode = #tpu.pipeline_mode<synchronous>, transform_indices = @transform_9, window_bounds = array<i64: 512, 128>}, {pipeline_mode = #tpu.pipeline_mode<synchronous>, transform_indices = @transform_10, window_bounds = array<i64: 1, 128>}, {pipeline_mode = #tpu.pipeline_mode<synchronous>, transform_indices = @transform_11, window_bounds = array<i64: 8, 128>}]} {
    %c0 = arith.constant 0 : index
    %c0_0 = arith.constant 0 : index
    %0 = vector.load %arg2[%c0, %c0_0] : memref<8x8xbf16, #tpu.memory_space<vmem>>, vector<8x8xbf16>
    %c0_1 = arith.constant 0 : index
    %c0_2 = arith.constant 0 : index
    %1 = vector.load %arg3[%c0_1, %c0_2] : memref<8x256xbf16, #tpu.memory_space<vmem>>, vector<8x256xbf16>
    %cst = arith.constant dense<0.000000e+00> : vector<8x256xf32>
    %2 = tpu.matmul %0, %1, %cst {dimension_numbers = #tpu.dot_dimension_numbers<[1], [0], [0], [1], [0, 0, 1, 1], [], []>} : vector<8x8xbf16>, vector<8x256xbf16>, vector<8x256xf32> -> vector<8x256xf32>
    %c0_3 = arith.constant 0 : index
    %c0_4 = arith.constant 0 : index
    %3 = vector.load %arg4[%c0_3, %c0_4] : memref<1x256xf32, #tpu.memory_space<vmem>>, vector<1x256xf32>
    %4 = vector.broadcast %3 : vector<1x256xf32> to vector<8x256xf32>
    %5 = arith.addf %2, %4 : vector<8x256xf32>
    %cst_5 = arith.constant 0.000000e+00 : f32
    %6 = vector.broadcast %cst_5 : f32 to vector<8x256xf32>
    %7 = arith.maximumf %5, %6 : vector<8x256xf32>
    %8 = arith.truncf %7 : vector<8x256xf32> to vector<8x256xbf16>
    %c0_6 = arith.constant 0 : index
    %c0_7 = arith.constant 0 : index
    %9 = vector.load %arg5[%c0_6, %c0_7] : memref<256x128xbf16, #tpu.memory_space<vmem>>, vector<256x128xbf16>
    %cst_8 = arith.constant dense<0.000000e+00> : vector<8x128xf32>
    %10 = tpu.matmul %8, %9, %cst_8 {dimension_numbers = #tpu.dot_dimension_numbers<[1], [0], [0], [1], [0, 0, 1, 1], [], []>} : vector<8x256xbf16>, vector<256x128xbf16>, vector<8x128xf32> -> vector<8x128xf32>
    %c0_9 = arith.constant 0 : index
    %c0_10 = arith.constant 0 : index
    %11 = vector.load %arg6[%c0_9, %c0_10] : memref<1x128xf32, #tpu.memory_space<vmem>>, vector<1x128xf32>
    %12 = vector.broadcast %11 : vector<1x128xf32> to vector<8x128xf32>
    %13 = arith.addf %10, %12 : vector<8x128xf32>
    %cst_11 = arith.constant 0.000000e+00 : f32
    %14 = vector.broadcast %cst_11 : f32 to vector<8x128xf32>
    %15 = arith.maximumf %13, %14 : vector<8x128xf32>
    %c0_12 = arith.constant 0 : index
    %c0_13 = arith.constant 0 : index
    %16 = vector.load %arg1[%c0_12, %c0_13] : memref<8x128xbf16, #tpu.memory_space<vmem>>, vector<8x128xbf16>
    %c0_14 = arith.constant 0 : index
    %c0_15 = arith.constant 0 : index
    %17 = vector.load %arg7[%c0_14, %c0_15] : memref<128x512xbf16, #tpu.memory_space<vmem>>, vector<128x512xbf16>
    %cst_16 = arith.constant dense<0.000000e+00> : vector<8x512xf32>
    %18 = tpu.matmul %16, %17, %cst_16 {dimension_numbers = #tpu.dot_dimension_numbers<[1], [0], [0], [1], [0, 0, 1, 1], [], []>} : vector<8x128xbf16>, vector<128x512xbf16>, vector<8x512xf32> -> vector<8x512xf32>
    %19 = arith.truncf %15 : vector<8x128xf32> to vector<8x128xbf16>
    %c0_17 = arith.constant 0 : index
    %c0_18 = arith.constant 0 : index
    %20 = vector.load %arg8[%c0_17, %c0_18] : memref<128x512xbf16, #tpu.memory_space<vmem>>, vector<128x512xbf16>
    %cst_19 = arith.constant dense<0.000000e+00> : vector<8x512xf32>
    %21 = tpu.matmul %19, %20, %cst_19 {dimension_numbers = #tpu.dot_dimension_numbers<[1], [0], [0], [1], [0, 0, 1, 1], [], []>} : vector<8x128xbf16>, vector<128x512xbf16>, vector<8x512xf32> -> vector<8x512xf32>
    %22 = arith.addf %18, %21 : vector<8x512xf32>
    %c0_20 = arith.constant 0 : index
    %c0_21 = arith.constant 0 : index
    %23 = vector.load %arg9[%c0_20, %c0_21] : memref<1x512xf32, #tpu.memory_space<vmem>>, vector<1x512xf32>
    %24 = vector.broadcast %23 : vector<1x512xf32> to vector<8x512xf32>
    %25 = arith.addf %22, %24 : vector<8x512xf32>
    %cst_22 = arith.constant 0.000000e+00 : f32
    %26 = vector.broadcast %cst_22 : f32 to vector<8x512xf32>
    %27 = arith.maximumf %25, %26 : vector<8x512xf32>
    %28 = arith.truncf %27 : vector<8x512xf32> to vector<8x512xbf16>
    %c0_23 = arith.constant 0 : index
    %c0_24 = arith.constant 0 : index
    %29 = vector.load %arg10[%c0_23, %c0_24] : memref<512x128xbf16, #tpu.memory_space<vmem>>, vector<512x128xbf16>
    %cst_25 = arith.constant dense<0.000000e+00> : vector<8x128xf32>
    %30 = tpu.matmul %28, %29, %cst_25 {dimension_numbers = #tpu.dot_dimension_numbers<[1], [0], [0], [1], [0, 0, 1, 1], [], []>} : vector<8x512xbf16>, vector<512x128xbf16>, vector<8x128xf32> -> vector<8x128xf32>
    %c0_26 = arith.constant 0 : index
    %c0_27 = arith.constant 0 : index
    %31 = vector.load %arg11[%c0_26, %c0_27] : memref<1x128xf32, #tpu.memory_space<vmem>>, vector<1x128xf32>
    %32 = vector.broadcast %31 : vector<1x128xf32> to vector<8x128xf32>
    %33 = arith.addf %30, %32 : vector<8x128xf32>
    %c0_28 = arith.constant 0 : index
    %c0_29 = arith.constant 0 : index
    %34 = vector.load %arg12[%c0_28, %c0_29] : memref<8x128xf32, #tpu.memory_space<vmem>>, vector<8x128xf32>
    tpu.vector_store %arg12[%c0_28, %c0_29], %33 {strides = array<i32>} : memref<8x128xf32, #tpu.memory_space<vmem>>, vector<8x128xf32>,
    return
  }
  func.func @transform_0(%arg0: i32) -> (i32, i32) {
    %c0_i32 = arith.constant 0 : i32
    %c0_i32_0 = arith.constant 0 : i32
    %c0_i32_1 = arith.constant 0 : i32
    return %c0_i32, %c0_i32_0 : i32, i32
  }
  func.func @transform_1(%arg0: i32) -> (i32, i32) {
    %c0_i32 = arith.constant 0 : i32
    %c0_i32_0 = arith.constant 0 : i32
    %c0_i32_1 = arith.constant 0 : i32
    return %c0_i32, %c0_i32_0 : i32, i32
  }
  func.func @transform_2(%arg0: i32) -> (i32, i32) {
    %c0_i32 = arith.constant 0 : i32
    %c0_i32_0 = arith.constant 0 : i32
    %c0_i32_1 = arith.constant 0 : i32
    return %c0_i32, %c0_i32_0 : i32, i32
  }
  func.func @transform_3(%arg0: i32) -> (i32, i32) {
    %c0_i32 = arith.constant 0 : i32
    %c0_i32_0 = arith.constant 0 : i32
    %c0_i32_1 = arith.constant 0 : i32
    return %c0_i32, %c0_i32_0 : i32, i32
  }
  func.func @transform_4(%arg0: i32) -> (i32, i32) {
    %c0_i32 = arith.constant 0 : i32
    %c0_i32_0 = arith.constant 0 : i32
    %c0_i32_1 = arith.constant 0 : i32
    return %c0_i32, %c0_i32_0 : i32, i32
  }
  func.func @transform_5(%arg0: i32) -> (i32, i32) {
    %c0_i32 = arith.constant 0 : i32
    %c0_i32_0 = arith.constant 0 : i32
    %c0_i32_1 = arith.constant 0 : i32
    return %c0_i32, %c0_i32_0 : i32, i32
  }
  func.func @transform_6(%arg0: i32) -> (i32, i32) {
    %c0_i32 = arith.constant 0 : i32
    %c0_i32_0 = arith.constant 0 : i32
    %c0_i32_1 = arith.constant 0 : i32
    return %c0_i32, %c0_i32_0 : i32, i32
  }
  func.func @transform_7(%arg0: i32) -> (i32, i32) {
    %c0_i32 = arith.constant 0 : i32
    %c0_i32_0 = arith.constant 0 : i32
    %c0_i32_1 = arith.constant 0 : i32
    return %c0_i32, %c0_i32_0 : i32, i32
  }
  func.func @transform_8(%arg0: i32) -> (i32, i32) {
    %c0_i32 = arith.constant 0 : i32
    %c0_i32_0 = arith.constant 0 : i32
    %c0_i32_1 = arith.constant 0 : i32
    return %c0_i32, %c0_i32_0 : i32, i32
  }
  func.func @transform_9(%arg0: i32) -> (i32, i32) {
    %c0_i32 = arith.constant 0 : i32
    %c0_i32_0 = arith.constant 0 : i32
    %c0_i32_1 = arith.constant 0 : i32
    return %c0_i32, %c0_i32_0 : i32, i32
  }
  func.func @transform_10(%arg0: i32) -> (i32, i32) {
    %c0_i32 = arith.constant 0 : i32
    %c0_i32_0 = arith.constant 0 : i32
    %c0_i32_1 = arith.constant 0 : i32
    return %c0_i32, %c0_i32_0 : i32, i32
  }
  func.func @transform_11(%arg0: i32) -> (i32, i32) {
    %c0_i32 = arith.constant 0 : i32
    %c0_i32_0 = arith.constant 0 : i32
    %c0_i32_1 = arith.constant 0 : i32
    return %c0_i32, %c0_i32_0 : i32, i32
  }
}

</mosaic_0001>

<llo_original>
// kernel: combined_efficientnet_forward.2
$region0: #{combined_efficientnet_forward.2}
  #allocation0 [shape = 'u32[]', space=smem, size = 0x4, offset = 0x4, fixed_abs, tag = 'smem constant byte address 0x4 - core index']
  #allocation1 [shape = 'u32[144,128]{1,0:T(1,128)}', space=vmem, size = 0x12000, scoped, tag = 'internal scratch']
  #allocation2 [shape = 'f32[1,128]{1,0:T(1,128)}', space=vmem, size = 0x200, scoped, tag = 'scratch operand']
  %s0 = inlined_call_operand.vmem [shape: bf16[2,256,32], index: 0, kind: input, shape index: {}]
  %s1 = inlined_call_operand.vmem [shape: bf16[32,32], index: 1, kind: input, shape index: {}]
  %s2 = inlined_call_operand.vmem [shape: f32[1,32], index: 2, kind: input, shape index: {}]
  %s3 = inlined_call_operand.vmem [shape: bf16[32,128], index: 3, kind: input, shape index: {}]
  %s4 = inlined_call_operand.vmem [shape: f32[1,128], index: 4, kind: input, shape index: {}]
  %s5 = inlined_call_operand.vmem [shape: f32[2,1,128], index: 5, kind: output, shape index: {}]
  %s6 = sld [smem:[#allocation0]]
  $region61: #{combined_efficientnet_forward.2} parent=0
    _
  %s8 = ssub.s32 1, %s6
  %s9 = scalar_select 0, %s8, %s6
  loop: start=0, step=1, limit=4
  $region2: #{combined_efficientnet_forward.2} parent=0 // loop_pre_header
    _
  $region3: #{combined_efficientnet_forward.2} parent=0 // loop_header
    %s11 = sphi 0, %s15
    %p12 = scmp.ge.s32.totalorder %s11, 4
    %s18 = sphi 0, %s30
    %s19 = sphi 0, %s26
    %s20 = sphi 0, %s18
    %s21 = sphi 0, %s19
    %s22 = sphi 0, %s20
    %s23 = sphi 0, %s21
    %s35 = sphi 0, %s37
    %s38 = sphi 0, %s35
    %s39 = sphi 0, %s38
    %s55 = sphi 0, %s39
    %s59 = sphi 0, %s59
    %s61 = sphi 0, %s59
    %s62 = sphi 0, %s61
    %s76 = sphi 0, %s62
    %s80 = sphi 0, %s80
    %s82 = sphi 0, %s80
    %s83 = sphi 0, %s82
    %s97 = sphi 0, %s83
    %s101 = sphi 0, %s101
    %s103 = sphi 0, %s101
    %s104 = sphi 0, %s103
    %s118 = sphi 0, %s104
    %s122 = sphi 0, %s122
    %s124 = sphi 0, %s122
    %s125 = sphi 0, %s124
    %s139 = sphi 0, %s125
    %s145 = sphi 0, %s147
    %s148 = sphi 0, %s145
    %s149 = sphi 0, %s148
    %s165 = sphi 0, %s149
  $region4: #{combined_efficientnet_forward.2} parent=0 // loop_header_branch
    %14 = sbr.rel (%p12) target = $region8
  $region5: #{combined_efficientnet_forward.2} parent=0 // loop_body
    %s16 = ssub.s32 %s11, 1
    %s17 = ssub.s32 %s11, 2
    %s24 = sadd.s32 1, %s19
    %p25 = scmp.ge.s32.totalorder %s24, 1
    %s26 = scalar_select %p25, 0, %s24
    %s27 = sadd.s32 1, %s18
    %s28 = scalar_select %p25, %s27, %s18
    %p29 = scmp.ge.s32.totalorder %s28, 2
    %s30 = scalar_select %p29, 0, %s28
    %s31 = ssub.s32 %s18, %s30
    %s32 = ssub.s32 %s19, %s26
    %s33 = sor.u32 %s31, %s32
    %p34 = scmp.eq.s32.totalorder %s33, 0
    %s36 = sadd.s32 %s35, 1
    %s37 = scalar_select %p34, %s35, %s36
    %p40 = pneg %p34
    %p41 = scmp.eq.s32.totalorder %s11, 1
    %p42 = por %p40, %p41
    %p43 = scmp.ne.s32.totalorder %s35, %s38
    %p44 = scmp.eq.s32.totalorder %s11, 0
    %p45 = por %p43, %p44
    %p46 = scmp.ne.s32.totalorder %s35, %s38
    %p47 = scmp.eq.s32.totalorder %s16, 1
    %p48 = por %p46, %p47
    %p49 = scmp.ne.s32.totalorder %s38, %s39
    %p50 = scmp.eq.s32.totalorder %s16, 0
    %p51 = por %p49, %p50
    %p52 = scmp.ne.s32.totalorder %s38, %s39
    %p53 = scmp.eq.s32.totalorder %s17, 1
    %p54 = por %p52, %p53
    %p56 = scmp.ne.s32.totalorder %s39, %s55
    %p57 = scmp.eq.s32.totalorder %s17, 0
    %p58 = por %p56, %p57
    %s60 = sadd.s32 %s59, 1
    %p63 = scmp.eq.s32.totalorder %s11, 1
    %p64 = scmp.ne.s32.totalorder %s59, %s61
    %p65 = scmp.eq.s32.totalorder %s11, 0
    %p66 = por %p64, %p65
    %p67 = scmp.ne.s32.totalorder %s59, %s61
    %p68 = scmp.eq.s32.totalorder %s16, 1
    %p69 = por %p67, %p68
    %p70 = scmp.ne.s32.totalorder %s61, %s62
    %p71 = scmp.eq.s32.totalorder %s16, 0
    %p72 = por %p70, %p71
    %p73 = scmp.ne.s32.totalorder %s61, %s62
    %p74 = scmp.eq.s32.totalorder %s17, 1
    %p75 = por %p73, %p74
    %p77 = scmp.ne.s32.totalorder %s62, %s76
    %p78 = scmp.eq.s32.totalorder %s17, 0
    %p79 = por %p77, %p78
    %s81 = sadd.s32 %s80, 1
    %p84 = scmp.eq.s32.totalorder %s11, 1
    %p85 = scmp.ne.s32.totalorder %s80, %s82
    %p86 = scmp.eq.s32.totalorder %s11, 0
    %p87 = por %p85, %p86
    %p88 = scmp.ne.s32.totalorder %s80, %s82
    %p89 = scmp.eq.s32.totalorder %s16, 1
    %p90 = por %p88, %p89
    %p91 = scmp.ne.s32.totalorder %s82, %s83
    %p92 = scmp.eq.s32.totalorder %s16, 0
    %p93 = por %p91, %p92
    %p94 = scmp.ne.s32.totalorder %s82, %s83
    %p95 = scmp.eq.s32.totalorder %s17, 1
    %p96 = por %p94, %p95
    %p98 = scmp.ne.s32.totalorder %s83, %s97
    %p99 = scmp.eq.s32.totalorder %s17, 0
    %p100 = por %p98, %p99
    %s102 = sadd.s32 %s101, 1
    %p105 = scmp.eq.s32.totalorder %s11, 1
    %p106 = scmp.ne.s32.totalorder %s101, %s103
    %p107 = scmp.eq.s32.totalorder %s11, 0
    %p108 = por %p106, %p107
    %p109 = scmp.ne.s32.totalorder %s101, %s103
    %p110 = scmp.eq.s32.totalorder %s16, 1
    %p111 = por %p109, %p110
    %p112 = scmp.ne.s32.totalorder %s103, %s104
    %p113 = scmp.eq.s32.totalorder %s16, 0
    %p114 = por %p112, %p113
    %p115 = scmp.ne.s32.totalorder %s103, %s104
    %p116 = scmp.eq.s32.totalorder %s17, 1
    %p117 = por %p115, %p116
    %p119 = scmp.ne.s32.totalorder %s104, %s118
    %p120 = scmp.eq.s32.totalorder %s17, 0
    %p121 = por %p119, %p120
    %s123 = sadd.s32 %s122, 1
    %p126 = scmp.eq.s32.totalorder %s11, 1
    %p127 = scmp.ne.s32.totalorder %s122, %s124
    %p128 = scmp.eq.s32.totalorder %s11, 0
    %p129 = por %p127, %p128
    %p130 = scmp.ne.s32.totalorder %s122, %s124
    %p131 = scmp.eq.s32.totalorder %s16, 1
    %p132 = por %p130, %p131
    %p133 = scmp.ne.s32.totalorder %s124, %s125
    %p134 = scmp.eq.s32.totalorder %s16, 0
    %p135 = por %p133, %p134
    %p136 = scmp.ne.s32.totalorder %s124, %s125
    %p137 = scmp.eq.s32.totalorder %s17, 1
    %p138 = por %p136, %p137
    %p140 = scmp.ne.s32.totalorder %s125, %s139
    %p141 = scmp.eq.s32.totalorder %s17, 0
    %p142 = por %p140, %p141
    %s143 = ssub.s32 %s18, %s30
    %p144 = scmp.eq.s32.totalorder %s143, 0
    %s146 = sadd.s32 %s145, 1
    %s147 = scalar_select %p144, %s145, %s146
    %p150 = pneg %p144
    %p151 = scmp.eq.s32.totalorder %s11, 1
    %p152 = por %p150, %p151
    %p153 = scmp.ne.s32.totalorder %s145, %s148
    %p154 = scmp.eq.s32.totalorder %s11, 0
    %p155 = por %p153, %p154
    %p156 = scmp.ne.s32.totalorder %s145, %s148
    %p157 = scmp.eq.s32.totalorder %s16, 1
    %p158 = por %p156, %p157
    %p159 = scmp.ne.s32.totalorder %s148, %s149
    %p160 = scmp.eq.s32.totalorder %s16, 0
    %p161 = por %p159, %p160
    %p162 = scmp.ne.s32.totalorder %s148, %s149
    %p163 = scmp.eq.s32.totalorder %s17, 1
    %p164 = por %p162, %p163
    %p166 = scmp.ne.s32.totalorder %s149, %s165
    %p167 = scmp.eq.s32.totalorder %s17, 0
    %p168 = por %p166, %p167
    %p169 = scmp.le.s32.totalorder 1, %s11
    %p170 = scmp.lt.s32.totalorder %s11, 3
    %p171 = pnand %p169, %p170
    %p172 = pneg %p171
    // Predicated region
    $region9: #{combined_efficientnet_forward.2} parent=5 // pred_check
      _
    $region10: #{combined_efficientnet_forward.2} parent=5 // pred_check_branch
      %174 = sbr.rel (%p171) target = $region12
    $region11: #{combined_efficientnet_forward.2} parent=5 // pred_region
      %s175 = ssub.s32 %s11, 1
      // Predicated region
      $region13: #{combined_efficientnet_forward.2} parent=11 // pred_check
        %p176 = pneg %p72
      $region14: #{combined_efficientnet_forward.2} parent=11 // pred_check_branch
        %178 = sbr.rel (%p176) target = $region16
      $region15: #{combined_efficientnet_forward.2} parent=11 // pred_region
        _
      $region16: #{combined_efficientnet_forward.2} parent=11 // pred_fallthru
        _
      // Predicated region
      $region17: #{combined_efficientnet_forward.2} parent=11 // pred_check
        %p179 = pneg %p93
      $region18: #{combined_efficientnet_forward.2} parent=11 // pred_check_branch
        %181 = sbr.rel (%p179) target = $region20
      $region19: #{combined_efficientnet_forward.2} parent=11 // pred_region
        _
      $region20: #{combined_efficientnet_forward.2} parent=11 // pred_fallthru
        _
      // Predicated region
      $region21: #{combined_efficientnet_forward.2} parent=11 // pred_check
        %p182 = pneg %p114
      $region22: #{combined_efficientnet_forward.2} parent=11 // pred_check_branch
        %184 = sbr.rel (%p182) target = $region24
      $region23: #{combined_efficientnet_forward.2} parent=11 // pred_region
        _
      $region24: #{combined_efficientnet_forward.2} parent=11 // pred_fallthru
        _
      // Predicated region
      $region25: #{combined_efficientnet_forward.2} parent=11 // pred_check
        %p185 = pneg %p135
      $region26: #{combined_efficientnet_forward.2} parent=11 // pred_check_branch
        %187 = sbr.rel (%p185) target = $region28
      $region27: #{combined_efficientnet_forward.2} parent=11 // pred_region
        _
      $region28: #{combined_efficientnet_forward.2} parent=11 // pred_fallthru
        _
    $region12: #{combined_efficientnet_forward.2} parent=5 // pred_fallthru
      _
    %p188 = scmp.lt.s32.totalorder %s11, 2
    // Predicated region
    $region29: #{combined_efficientnet_forward.2} parent=5 // pred_check
      %p189 = pneg %p188
    $region30: #{combined_efficientnet_forward.2} parent=5 // pred_check_branch
      %191 = sbr.rel (%p189) target = $region32
    $region31: #{combined_efficientnet_forward.2} parent=5 // pred_region
      // Predicated region
      $region33: #{combined_efficientnet_forward.2} parent=31 // pred_check
        %p192 = pneg %p45
      $region34: #{combined_efficientnet_forward.2} parent=31 // pred_check_branch
        %194 = sbr.rel (%p192) target = $region36
      $region35: #{combined_efficientnet_forward.2} parent=31 // pred_region
        %s195 = smul.u32 32, %s19
        %p196 = scmp.lt.s32.totalorder %s18, 1
        %s197 = scalar_select %p196, %s18, 1
        %p198 = scmp.lt.s32.totalorder %s195, 31
        %s199 = scalar_select %p198, %s195, 31
        %s200 = smul.addr %s197, 32
        %s201 = sadd.s32 %s199, %s200
        %s202 = smul.addr %s201, 4
        %s203 = scalar_lea.vmem %s0, %s202
        %s204 = smul.u32 32, %s19
      $region36: #{combined_efficientnet_forward.2} parent=31 // pred_fallthru
        _
    $region32: #{combined_efficientnet_forward.2} parent=5 // pred_fallthru
      _
    %p205 = scmp.le.s32.totalorder 1, %s11
    %p206 = scmp.lt.s32.totalorder %s11, 3
    %p207 = pnand %p205, %p206
    %p208 = pneg %p207
    // Predicated region
    $region37: #{combined_efficientnet_forward.2} parent=5 // pred_check
      _
    $region38: #{combined_efficientnet_forward.2} parent=5 // pred_check_branch
      %210 = sbr.rel (%p207) target = $region40
    $region39: #{combined_efficientnet_forward.2} parent=5 // pred_region
      %s211 = ssub.s32 %s11, 1
      %s212 = smul.u32 32, %s21
      %p213 = scmp.lt.s32.totalorder %s20, 1
      %s214 = scalar_select %p213, %s20, 1
      %p215 = scmp.lt.s32.totalorder %s212, 31
      %s216 = scalar_select %p215, %s212, 31
      %s217 = smul.addr %s214, 32
      %s218 = sadd.s32 %s216, %s217
      %s219 = smul.addr %s218, 4
      %s220 = scalar_lea.vmem %s0, %s219
      %p221 = pneg %p51
      %p222 = pneg %p48
      %p223 = pneg %p72
      %p224 = pneg %p69
      %p225 = pneg %p93
      %p226 = pneg %p90
      %p227 = pneg %p114
      %p228 = pneg %p111
      %p229 = pneg %p135
      %p230 = pneg %p132
      %p231 = pneg %p161
      %p232 = pneg %p158
      %p233 = scmp.lt.s32.totalorder %s20, 1
      %s234 = scalar_select %p233, %s20, 1
      %s235 = scalar_lea.vmem %s5, %s234
      %s236 = smul.u32 32, %s21
      %p237 = scmp.lt.s32.totalorder %s20, 1
      %s238 = scalar_select %p237, %s20, 1
      %p239 = scmp.lt.s32.totalorder %s236, 31
      %s240 = scalar_select %p239, %s236, 31
      %s241 = smul.addr %s238, 32
      %s242 = sadd.s32 %s240, %s241
      %s243 = smul.addr %s242, 4
      %s244 = scalar_lea.vmem %s0, %s243
      %s245 = smul.u32 32, %s21
      %p246 = scmp.lt.s32.totalorder %s20, 1
      %s247 = scalar_select %p246, %s20, 1
      %s248 = scalar_lea.vmem %s5, %s247
      %p250 = scmp.eq.s32.totalorder %s21, 0
      // Predicated region
      $region41: #{combined_efficientnet_forward.2} parent=39 // pred_check
        %p251 = pneg %p250
      $region42: #{combined_efficientnet_forward.2} parent=39 // pred_check_branch
        %253 = sbr.rel (%p251) target = $region44
      $region43: #{combined_efficientnet_forward.2} parent=39 // pred_region
        %254 = vst [vmem:[#allocation2] sm:$0x1] 0.0
      $region44: #{combined_efficientnet_forward.2} parent=39 // pred_fallthru
        _
      %v255 = vld [vmem:[%s244] sm:$0xf]
      %v256 = vld [vmem:[%s244 + $0x4] sm:$0xf]
      %v257 = vld [vmem:[%s244 + $0x8] sm:$0xf]
      %v258 = vld [vmem:[%s244 + $0xc] sm:$0xf]
      %v259 = vld [vmem:[%s244 + $0x10] sm:$0xf]
      %v260 = vld [vmem:[%s244 + $0x14] sm:$0xf]
      %v261 = vld [vmem:[%s244 + $0x18] sm:$0xf]
      %v262 = vld [vmem:[%s244 + $0x1c] sm:$0xf]
      %v263 = vld [vmem:[%s244 + $0x20] sm:$0xf]
      %v264 = vld [vmem:[%s244 + $0x24] sm:$0xf]
      %v265 = vld [vmem:[%s244 + $0x28] sm:$0xf]
      %v266 = vld [vmem:[%s244 + $0x2c] sm:$0xf]
      %v267 = vld [vmem:[%s244 + $0x30] sm:$0xf]
      %v268 = vld [vmem:[%s244 + $0x34] sm:$0xf]
      %v269 = vld [vmem:[%s244 + $0x38] sm:$0xf]
      %v270 = vld [vmem:[%s244 + $0x3c] sm:$0xf]
      %v271 = vld [vmem:[%s244 + $0x40] sm:$0xf]
      %v272 = vld [vmem:[%s244 + $0x44] sm:$0xf]
      %v273 = vld [vmem:[%s244 + $0x48] sm:$0xf]
      %v274 = vld [vmem:[%s244 + $0x4c] sm:$0xf]
      %v275 = vld [vmem:[%s244 + $0x50] sm:$0xf]
      %v276 = vld [vmem:[%s244 + $0x54] sm:$0xf]
      %v277 = vld [vmem:[%s244 + $0x58] sm:$0xf]
      %v278 = vld [vmem:[%s244 + $0x5c] sm:$0xf]
      %v279 = vld [vmem:[%s244 + $0x60] sm:$0xf]
      %v280 = vld [vmem:[%s244 + $0x64] sm:$0xf]
      %v281 = vld [vmem:[%s244 + $0x68] sm:$0xf]
      %v282 = vld [vmem:[%s244 + $0x6c] sm:$0xf]
      %v283 = vld [vmem:[%s244 + $0x70] sm:$0xf]
      %v284 = vld [vmem:[%s244 + $0x74] sm:$0xf]
      %v285 = vld [vmem:[%s244 + $0x78] sm:$0xf]
      %v286 = vld [vmem:[%s244 + $0x7c] sm:$0xf]
      %v287 = vld [vmem:[%s1] sm:$0xf]
      %v288 = vld [vmem:[%s1 + $0x4] sm:$0xf]
      %v289 = vld [vmem:[%s1 + $0x8] sm:$0xf]
      %v290 = vld [vmem:[%s1 + $0xc] sm:$0xf]
      %v291 = vld [vmem:[%s2] sm:$0x1]
      %v293 = vlaneseq
      %v294 = vshrl.u32 %v293, 7
      %v295 = vsub.s32 0, %v294
      %v296 = vrot.slane %v291, %v295
      %v330 = vunpack.c.l.b16 %v255
      %v331 = vunpack.c.l.b16 %v256
      %v332 = vunpack.c.l.b16 %v257
      %v333 = vunpack.c.l.b16 %v258
      %v334 = vunpack.c.l.b16 %v259
      %v335 = vunpack.c.l.b16 %v260
      %v336 = vunpack.c.l.b16 %v261
      %v337 = vunpack.c.l.b16 %v262
      %v338 = vunpack.c.l.b16 %v263
      %v339 = vunpack.c.l.b16 %v264
      %v340 = vunpack.c.l.b16 %v265
      %v341 = vunpack.c.l.b16 %v266
      %v342 = vunpack.c.l.b16 %v267
      %v343 = vunpack.c.l.b16 %v268
      %v344 = vunpack.c.l.b16 %v269
      %v345 = vunpack.c.l.b16 %v270
      %v346 = vunpack.c.l.b16 %v271
      %v347 = vunpack.c.l.b16 %v272
      %v348 = vunpack.c.l.b16 %v273
      %v349 = vunpack.c.l.b16 %v274
      %v350 = vunpack.c.l.b16 %v275
      %v351 = vunpack.c.l.b16 %v276
      %v352 = vunpack.c.l.b16 %v277
      %v353 = vunpack.c.l.b16 %v278
      %v354 = vunpack.c.l.b16 %v279
      %v355 = vunpack.c.l.b16 %v280
      %v356 = vunpack.c.l.b16 %v281
      %v357 = vunpack.c.l.b16 %v282
      %v358 = vunpack.c.l.b16 %v283
      %v359 = vunpack.c.l.b16 %v284
      %v360 = vunpack.c.l.b16 %v285
      %v361 = vunpack.c.l.b16 %v286
      %v362 = vpack.c.b16 %v331, %v330
      %v363 = vpack.c.b16 %v333, %v332
      %v364 = vpack.c.b16 %v335, %v334
      %v365 = vpack.c.b16 %v337, %v336
      %v366 = vpack.c.b16 %v339, %v338
      %v367 = vpack.c.b16 %v341, %v340
      %v368 = vpack.c.b16 %v343, %v342
      %v369 = vpack.c.b16 %v345, %v344
      %v370 = vpack.c.b16 %v347, %v346
      %v371 = vpack.c.b16 %v349, %v348
      %v372 = vpack.c.b16 %v351, %v350
      %v373 = vpack.c.b16 %v353, %v352
      %v374 = vpack.c.b16 %v355, %v354
      %v375 = vpack.c.b16 %v357, %v356
      %v376 = vpack.c.b16 %v359, %v358
      %v377 = vpack.c.b16 %v361, %v360
      %v382 = vunpack.c.l.b16 %v287
      %v383 = vunpack.c.l.b16 %v288
      %v384 = vunpack.c.l.b16 %v289
      %v385 = vunpack.c.l.b16 %v290
      %v386 = vpack.c.b16 %v383, %v382
      %v387 = vpack.c.b16 %v385, %v384
      %vm390 = vcmask 261120
      %v392 = vsel %vm390, %v362, 0
      %v395 = vsel %vm390, %v363, 0
      %v398 = vsel %vm390, %v364, 0
      %v401 = vsel %vm390, %v365, 0
      %v404 = vsel %vm390, %v366, 0
      %v407 = vsel %vm390, %v367, 0
      %v410 = vsel %vm390, %v368, 0
      %v413 = vsel %vm390, %v369, 0
      %v416 = vsel %vm390, %v370, 0
      %v419 = vsel %vm390, %v371, 0
      %v422 = vsel %vm390, %v372, 0
      %v425 = vsel %vm390, %v373, 0
      %v428 = vsel %vm390, %v374, 0
      %v431 = vsel %vm390, %v375, 0
      %v434 = vsel %vm390, %v376, 0
      %v437 = vsel %vm390, %v377, 0
      %439 = vmatprep.subr.bf16.mxu0 0
      %440 = vmatpush1.bf16.msra.mxu0 %v386
      %441 = vmatprep.subr.bf16.mxu0 0
      %442 = vmatpush1.bf16.msra.mxu0 %v387
      %443 = vmatprep.subr.bf16.mxu0 0
      %444 = vmatpush1.bf16.msra.mxu0 0
      %445 = vmatprep.subr.bf16.mxu0 0
      %446 = vmatpush1.bf16.msra.mxu0 0
      %447 = vmatprep.subr.bf16.mxu0 0
      %448 = vmatpush1.bf16.msra.mxu0 0
      %449 = vmatprep.subr.bf16.mxu0 0
      %450 = vmatpush1.bf16.msra.mxu0 0
      %451 = vmatprep.subr.bf16.mxu0 0
      %452 = vmatpush1.bf16.msra.mxu0 0
      %453 = vmatprep.subr.bf16.mxu0 0
      %454 = vmatpush1.bf16.msra.mxu0 0
      %455 = vmatprep.subr.bf16.mxu0 0
      %456 = vmatpush1.bf16.msra.mxu0 0
      %457 = vmatprep.subr.bf16.mxu0 0
      %458 = vmatpush1.bf16.msra.mxu0 0
      %459 = vmatprep.subr.bf16.mxu0 0
      %460 = vmatpush1.bf16.msra.mxu0 0
      %461 = vmatprep.subr.bf16.mxu0 0
      %462 = vmatpush1.bf16.msra.mxu0 0
      %463 = vmatprep.subr.bf16.mxu0 0
      %464 = vmatpush1.bf16.msra.mxu0 0
      %465 = vmatprep.subr.bf16.mxu0 0
      %466 = vmatpush1.bf16.msra.mxu0 0
      %467 = vmatprep.subr.bf16.mxu0 0
      %468 = vmatpush1.bf16.msra.mxu0 0
      %469 = vmatprep.subr.bf16.mxu0 0
      %470 = vmatpush1.bf16.msra.mxu0 0
      %471 = vmatprep.mubr.bf16.mxu0 0
      %472 = vmatmul.mubr.bf16.gmra.mrb[0].mxu0 %v392
      %v473 = vpop.f32.mrb[0].mxu0
      %v474 = vadd.f32 %v296, %v473
      %v475 = vpop.f32.mrb[0].mxu0
      %v476 = vpop.f32.mrb[0].mxu0
      %v477 = vadd.f32 %v296, %v476
      %v478 = vpop.f32.mrb[0].mxu0
      %479 = vmatprep.mubr.bf16.mxu0 0
      %480 = vmatmul.mubr.bf16.gmra.mrb[0].mxu0 %v395
      %v481 = vpop.f32.mrb[0].mxu0
      %v482 = vadd.f32 %v296, %v481
      %v483 = vpop.f32.mrb[0].mxu0
      %v484 = vpop.f32.mrb[0].mxu0
      %v485 = vadd.f32 %v296, %v484
      %v486 = vpop.f32.mrb[0].mxu0
      %487 = vmatprep.mubr.bf16.mxu0 0
      %488 = vmatmul.mubr.bf16.gmra.mrb[0].mxu0 %v398
      %v489 = vpop.f32.mrb[0].mxu0
      %v490 = vadd.f32 %v296, %v489
      %v491 = vpop.f32.mrb[0].mxu0
      %v492 = vpop.f32.mrb[0].mxu0
      %v493 = vadd.f32 %v296, %v492
      %v494 = vpop.f32.mrb[0].mxu0
      %495 = vmatprep.mubr.bf16.mxu0 0
      %496 = vmatmul.mubr.bf16.gmra.mrb[0].mxu0 %v401
      %v497 = vpop.f32.mrb[0].mxu0
      %v498 = vadd.f32 %v296, %v497
      %v499 = vpop.f32.mrb[0].mxu0
      %v500 = vpop.f32.mrb[0].mxu0
      %v501 = vadd.f32 %v296, %v500
      %v502 = vpop.f32.mrb[0].mxu0
      %503 = vmatprep.mubr.bf16.mxu0 0
      %504 = vmatmul.mubr.bf16.gmra.mrb[0].mxu0 %v404
      %v505 = vpop.f32.mrb[0].mxu0
      %v506 = vadd.f32 %v296, %v505
      %v507 = vpop.f32.mrb[0].mxu0
      %v508 = vpop.f32.mrb[0].mxu0
      %v509 = vadd.f32 %v296, %v508
      %v510 = vpop.f32.mrb[0].mxu0
      %511 = vmatprep.mubr.bf16.mxu0 0
      %512 = vmatmul.mubr.bf16.gmra.mrb[0].mxu0 %v407
      %v513 = vpop.f32.mrb[0].mxu0
      %v514 = vadd.f32 %v296, %v513
      %v515 = vpop.f32.mrb[0].mxu0
      %v516 = vpop.f32.mrb[0].mxu0
      %v517 = vadd.f32 %v296, %v516
      %v518 = vpop.f32.mrb[0].mxu0
      %519 = vmatprep.mubr.bf16.mxu0 0
      %520 = vmatmul.mubr.bf16.gmra.mrb[0].mxu0 %v410
      %v521 = vpop.f32.mrb[0].mxu0
      %v522 = vadd.f32 %v296, %v521
      %v523 = vpop.f32.mrb[0].mxu0
      %v524 = vpop.f32.mrb[0].mxu0
      %v525 = vadd.f32 %v296, %v524
      %v526 = vpop.f32.mrb[0].mxu0
      %527 = vmatprep.mubr.bf16.mxu0 0
      %528 = vmatmul.mubr.bf16.gmra.mrb[0].mxu0 %v413
      %v529 = vpop.f32.mrb[0].mxu0
      %v530 = vadd.f32 %v296, %v529
      %v531 = vpop.f32.mrb[0].mxu0
      %v532 = vpop.f32.mrb[0].mxu0
      %v533 = vadd.f32 %v296, %v532
      %v534 = vpop.f32.mrb[0].mxu0
      %535 = vmatprep.mubr.bf16.mxu0 0
      %536 = vmatmul.mubr.bf16.gmra.mrb[0].mxu0 %v416
      %v537 = vpop.f32.mrb[0].mxu0
      %v538 = vadd.f32 %v296, %v537
      %v539 = vpop.f32.mrb[0].mxu0
      %v540 = vpop.f32.mrb[0].mxu0
      %v541 = vadd.f32 %v296, %v540
      %v542 = vpop.f32.mrb[0].mxu0
      %543 = vmatprep.mubr.bf16.mxu0 0
      %544 = vmatmul.mubr.bf16.gmra.mrb[0].mxu0 %v419
      %v545 = vpop.f32.mrb[0].mxu0
      %v546 = vadd.f32 %v296, %v545
      %v547 = vpop.f32.mrb[0].mxu0
      %v548 = vpop.f32.mrb[0].mxu0
      %v549 = vadd.f32 %v296, %v548
      %v550 = vpop.f32.mrb[0].mxu0
      %551 = vmatprep.mubr.bf16.mxu0 0
      %552 = vmatmul.mubr.bf16.gmra.mrb[0].mxu0 %v422
      %v553 = vpop.f32.mrb[0].mxu0
      %v554 = vadd.f32 %v296, %v553
      %v555 = vpop.f32.mrb[0].mxu0
      %v556 = vpop.f32.mrb[0].mxu0
      %v557 = vadd.f32 %v296, %v556
      %v558 = vpop.f32.mrb[0].mxu0
      %559 = vmatprep.mubr.bf16.mxu0 0
      %560 = vmatmul.mubr.bf16.gmra.mrb[0].mxu0 %v425
      %v561 = vpop.f32.mrb[0].mxu0
      %v562 = vadd.f32 %v296, %v561
      %v563 = vpop.f32.mrb[0].mxu0
      %v564 = vpop.f32.mrb[0].mxu0
      %v565 = vadd.f32 %v296, %v564
      %v566 = vpop.f32.mrb[0].mxu0
      %567 = vmatprep.mubr.bf16.mxu0 0
      %568 = vmatmul.mubr.bf16.gmra.mrb[0].mxu0 %v428
      %v569 = vpop.f32.mrb[0].mxu0
      %v570 = vadd.f32 %v296, %v569
      %v571 = vpop.f32.mrb[0].mxu0
      %v572 = vpop.f32.mrb[0].mxu0
      %v573 = vadd.f32 %v296, %v572
      %v574 = vpop.f32.mrb[0].mxu0
      %575 = vmatprep.mubr.bf16.mxu0 0
      %576 = vmatmul.mubr.bf16.gmra.mrb[0].mxu0 %v431
      %v577 = vpop.f32.mrb[0].mxu0
      %v578 = vadd.f32 %v296, %v577
      %v579 = vpop.f32.mrb[0].mxu0
      %v580 = vpop.f32.mrb[0].mxu0
      %v581 = vadd.f32 %v296, %v580
      %v582 = vpop.f32.mrb[0].mxu0
      %583 = vmatprep.mubr.bf16.mxu0 0
      %584 = vmatmul.mubr.bf16.gmra.mrb[0].mxu0 %v434
      %v585 = vpop.f32.mrb[0].mxu0
      %v586 = vadd.f32 %v296, %v585
      %v587 = vpop.f32.mrb[0].mxu0
      %v588 = vpop.f32.mrb[0].mxu0
      %v589 = vadd.f32 %v296, %v588
      %v590 = vpop.f32.mrb[0].mxu0
      %591 = vmatprep.mubr.bf16.mxu0 0
      %592 = vmatmul.mubr.bf16.gmra.mrb[0].mxu0 %v437
      %v593 = vpop.f32.mrb[0].mxu0
      %v594 = vadd.f32 %v296, %v593
      %v595 = vpop.f32.mrb[0].mxu0
      %v596 = vpop.f32.mrb[0].mxu0
      %v597 = vadd.f32 %v296, %v596
      %v598 = vpop.f32.mrb[0].mxu0
      %599 = vdwg.mxu0
      %v600 = vxor.u32 %v474, 2147483648
      %v601 = vxor.u32 %v477, 2147483648
      %v602 = vxor.u32 %v482, 2147483648
      %v603 = vxor.u32 %v485, 2147483648
      %v604 = vxor.u32 %v490, 2147483648
      %v605 = vxor.u32 %v493, 2147483648
      %v606 = vxor.u32 %v498, 2147483648
      %v607 = vxor.u32 %v501, 2147483648
      %v608 = vxor.u32 %v506, 2147483648
      %v609 = vxor.u32 %v509, 2147483648
      %v610 = vxor.u32 %v514, 2147483648
      %v611 = vxor.u32 %v517, 2147483648
      %v612 = vxor.u32 %v522, 2147483648
      %v613 = vxor.u32 %v525, 2147483648
      %v614 = vxor.u32 %v530, 2147483648
      %v615 = vxor.u32 %v533, 2147483648
      %v616 = vxor.u32 %v538, 2147483648
      %v617 = vxor.u32 %v541, 2147483648
      %v618 = vxor.u32 %v546, 2147483648
      %v619 = vxor.u32 %v549, 2147483648
      %v620 = vxor.u32 %v554, 2147483648
      %v621 = vxor.u32 %v557, 2147483648
      %v622 = vxor.u32 %v562, 2147483648
      %v623 = vxor.u32 %v565, 2147483648
      %v624 = vxor.u32 %v570, 2147483648
      %v625 = vxor.u32 %v573, 2147483648
      %v626 = vxor.u32 %v578, 2147483648
      %v627 = vxor.u32 %v581, 2147483648
      %v628 = vxor.u32 %v586, 2147483648
      %v629 = vxor.u32 %v589, 2147483648
      %v630 = vxor.u32 %v594, 2147483648
      %v631 = vxor.u32 %v597, 2147483648
      %v632 = vmul.f32 %v600, 1.442695
      %v633 = vpow.pop %v632
      %v634 = vmul.f32 %v601, 1.442695
      %v635 = vpow.pop %v634
      %v636 = vmul.f32 %v602, 1.442695
      %v637 = vpow.pop %v636
      %v638 = vmul.f32 %v603, 1.442695
      %v639 = vpow.pop %v638
      %v640 = vmul.f32 %v604, 1.442695
      %v641 = vpow.pop %v640
      %v642 = vmul.f32 %v605, 1.442695
      %v643 = vpow.pop %v642
      %v644 = vmul.f32 %v606, 1.442695
      %v645 = vpow.pop %v644
      %v646 = vmul.f32 %v607, 1.442695
      %v647 = vpow.pop %v646
      %v648 = vmul.f32 %v608, 1.442695
      %v649 = vpow.pop %v648
      %v650 = vmul.f32 %v609, 1.442695
      %v651 = vpow.pop %v650
      %v652 = vmul.f32 %v610, 1.442695
      %v653 = vpow.pop %v652
      %v654 = vmul.f32 %v611, 1.442695
      %v655 = vpow.pop %v654
      %v656 = vmul.f32 %v612, 1.442695
      %v657 = vpow.pop %v656
      %v658 = vmul.f32 %v613, 1.442695
      %v659 = vpow.pop %v658
      %v660 = vmul.f32 %v614, 1.442695
      %v661 = vpow.pop %v660
      %v662 = vmul.f32 %v615, 1.442695
      %v663 = vpow.pop %v662
      %v664 = vmul.f32 %v616, 1.442695
      %v665 = vpow.pop %v664
      %v666 = vmul.f32 %v617, 1.442695
      %v667 = vpow.pop %v666
      %v668 = vmul.f32 %v618, 1.442695
      %v669 = vpow.pop %v668
      %v670 = vmul.f32 %v619, 1.442695
      %v671 = vpow.pop %v670
      %v672 = vmul.f32 %v620, 1.442695
      %v673 = vpow.pop %v672
      %v674 = vmul.f32 %v621, 1.442695
      %v675 = vpow.pop %v674
      %v676 = vmul.f32 %v622, 1.442695
      %v677 = vpow.pop %v676
      %v678 = vmul.f32 %v623, 1.442695
      %v679 = vpow.pop %v678
      %v680 = vmul.f32 %v624, 1.442695
      %v681 = vpow.pop %v680
      %v682 = vmul.f32 %v625, 1.442695
      %v683 = vpow.pop %v682
      %v684 = vmul.f32 %v626, 1.442695
      %v685 = vpow.pop %v684
      %v686 = vmul.f32 %v627, 1.442695
      %v687 = vpow.pop %v686
      %v688 = vmul.f32 %v628, 1.442695
      %v689 = vpow.pop %v688
      %v690 = vmul.f32 %v629, 1.442695
      %v691 = vpow.pop %v690
      %v692 = vmul.f32 %v630, 1.442695
      %v693 = vpow.pop %v692
      %v694 = vmul.f32 %v631, 1.442695
      %v695 = vpow.pop %v694
      %v696 = vadd.f32 %v633, 1.0
      %v697 = vadd.f32 %v635, 1.0
      %v698 = vadd.f32 %v637, 1.0
      %v699 = vadd.f32 %v639, 1.0
      %v700 = vadd.f32 %v641, 1.0
      %v701 = vadd.f32 %v643, 1.0
      %v702 = vadd.f32 %v645, 1.0
      %v703 = vadd.f32 %v647, 1.0
      %v704 = vadd.f32 %v649, 1.0
      %v705 = vadd.f32 %v651, 1.0
      %v706 = vadd.f32 %v653, 1.0
      %v707 = vadd.f32 %v655, 1.0
      %v708 = vadd.f32 %v657, 1.0
      %v709 = vadd.f32 %v659, 1.0
      %v710 = vadd.f32 %v661, 1.0
      %v711 = vadd.f32 %v663, 1.0
      %v712 = vadd.f32 %v665, 1.0
      %v713 = vadd.f32 %v667, 1.0
      %v714 = vadd.f32 %v669, 1.0
      %v715 = vadd.f32 %v671, 1.0
      %v716 = vadd.f32 %v673, 1.0
      %v717 = vadd.f32 %v675, 1.0
      %v718 = vadd.f32 %v677, 1.0
      %v719 = vadd.f32 %v679, 1.0
      %v720 = vadd.f32 %v681, 1.0
      %v721 = vadd.f32 %v683, 1.0
      %v722 = vadd.f32 %v685, 1.0
      %v723 = vadd.f32 %v687, 1.0
      %v724 = vadd.f32 %v689, 1.0
      %v725 = vadd.f32 %v691, 1.0
      %v726 = vadd.f32 %v693, 1.0
      %v727 = vadd.f32 %v695, 1.0
      %v728 = vrcp.pop %v696
      %v729 = vmul.f32 1.0, %v728
      %v730 = vrcp.pop %v697
      %v731 = vmul.f32 1.0, %v730
      %v732 = vrcp.pop %v698
      %v733 = vmul.f32 1.0, %v732
      %v734 = vrcp.pop %v699
      %v735 = vmul.f32 1.0, %v734
      %v736 = vrcp.pop %v700
      %v737 = vmul.f32 1.0, %v736
      %v738 = vrcp.pop %v701
      %v739 = vmul.f32 1.0, %v738
      %v740 = vrcp.pop %v702
      %v741 = vmul.f32 1.0, %v740
      %v742 = vrcp.pop %v703
      %v743 = vmul.f32 1.0, %v742
      %v744 = vrcp.pop %v704
      %v745 = vmul.f32 1.0, %v744
      %v746 = vrcp.pop %v705
      %v747 = vmul.f32 1.0, %v746
      %v748 = vrcp.pop %v706
      %v749 = vmul.f32 1.0, %v748
      %v750 = vrcp.pop %v707
      %v751 = vmul.f32 1.0, %v750
      %v752 = vrcp.pop %v708
      %v753 = vmul.f32 1.0, %v752
      %v754 = vrcp.pop %v709
      %v755 = vmul.f32 1.0, %v754
      %v756 = vrcp.pop %v710
      %v757 = vmul.f32 1.0, %v756
      %v758 = vrcp.pop %v711
      %v759 = vmul.f32 1.0, %v758
      %v760 = vrcp.pop %v712
      %v761 = vmul.f32 1.0, %v760
      %v762 = vrcp.pop %v713
      %v763 = vmul.f32 1.0, %v762
      %v764 = vrcp.pop %v714
      %v765 = vmul.f32 1.0, %v764
      %v766 = vrcp.pop %v715
      %v767 = vmul.f32 1.0, %v766
      %v768 = vrcp.pop %v716
      %v769 = vmul.f32 1.0, %v768
      %v770 = vrcp.pop %v717
      %v771 = vmul.f32 1.0, %v770
      %v772 = vrcp.pop %v718
      %v773 = vmul.f32 1.0, %v772
      %v774 = vrcp.pop %v719
      %v775 = vmul.f32 1.0, %v774
      %v776 = vrcp.pop %v720
      %v777 = vmul.f32 1.0, %v776
      %v778 = vrcp.pop %v721
      %v779 = vmul.f32 1.0, %v778
      %v780 = vrcp.pop %v722
      %v781 = vmul.f32 1.0, %v780
      %v782 = vrcp.pop %v723
      %v783 = vmul.f32 1.0, %v782
      %v784 = vrcp.pop %v724
      %v785 = vmul.f32 1.0, %v784
      %v786 = vrcp.pop %v725
      %v787 = vmul.f32 1.0, %v786
      %v788 = vrcp.pop %v726
      %v789 = vmul.f32 1.0, %v788
      %v790 = vrcp.pop %v727
      %v791 = vmul.f32 1.0, %v790
      %v792 = vmul.f32 %v474, %v729
      %v793 = vmul.f32 %v477, %v731
      %v794 = vmul.f32 %v482, %v733
      %v795 = vmul.f32 %v485, %v735
      %v796 = vmul.f32 %v490, %v737
      %v797 = vmul.f32 %v493, %v739
      %v798 = vmul.f32 %v498, %v741
      %v799 = vmul.f32 %v501, %v743
      %v800 = vmul.f32 %v506, %v745
      %v801 = vmul.f32 %v509, %v747
      %v802 = vmul.f32 %v514, %v749
      %v803 = vmul.f32 %v517, %v751
      %v804 = vmul.f32 %v522, %v753
      %v805 = vmul.f32 %v525, %v755
      %v806 = vmul.f32 %v530, %v757
      %v807 = vmul.f32 %v533, %v759
      %v808 = vmul.f32 %v538, %v761
      %v809 = vmul.f32 %v541, %v763
      %v810 = vmul.f32 %v546, %v765
      %v811 = vmul.f32 %v549, %v767
      %v812 = vmul.f32 %v554, %v769
      %v813 = vmul.f32 %v557, %v771
      %v814 = vmul.f32 %v562, %v773
      %v815 = vmul.f32 %v565, %v775
      %v816 = vmul.f32 %v570, %v777
      %v817 = vmul.f32 %v573, %v779
      %v818 = vmul.f32 %v578, %v781
      %v819 = vmul.f32 %v581, %v783
      %v820 = vmul.f32 %v586, %v785
      %v821 = vmul.f32 %v589, %v787
      %v822 = vmul.f32 %v594, %v789
      %v823 = vmul.f32 %v597, %v791
      %v824 = vpack.c.bf16 %v793, %v792
      %v825 = vpack.c.bf16 %v795, %v794
      %v826 = vpack.c.bf16 %v797, %v796
      %v827 = vpack.c.bf16 %v799, %v798
      %v828 = vpack.c.bf16 %v801, %v800
      %v829 = vpack.c.bf16 %v803, %v802
      %v830 = vpack.c.bf16 %v805, %v804
      %v831 = vpack.c.bf16 %v807, %v806
      %v832 = vpack.c.bf16 %v809, %v808
      %v833 = vpack.c.bf16 %v811, %v810
      %v834 = vpack.c.bf16 %v813, %v812
      %v835 = vpack.c.bf16 %v815, %v814
      %v836 = vpack.c.bf16 %v817, %v816
      %v837 = vpack.c.bf16 %v819, %v818
      %v838 = vpack.c.bf16 %v821, %v820
      %v839 = vpack.c.bf16 %v823, %v822
      %v840 = vld [vmem:[%s3] sm:$0xf]
      %v841 = vld [vmem:[%s3 + $0x4] sm:$0xf]
      %v842 = vld [vmem:[%s3 + $0x8] sm:$0xf]
      %v843 = vld [vmem:[%s3 + $0xc] sm:$0xf]
      %v844 = vld [vmem:[%s4] sm:$0x1]
      %v846 = vlaneseq
      %v847 = vshrl.u32 %v846, 7
      %v848 = vsub.s32 0, %v847
      %v849 = vrot.slane %v844, %v848
      %v855 = vunpack.c.l.b16 %v840
      %v856 = vunpack.c.l.b16 %v841
      %v857 = vunpack.c.l.b16 %v842
      %v858 = vunpack.c.l.b16 %v843
      %v859 = vpack.c.b16 %v856, %v855
      %v860 = vpack.c.b16 %v858, %v857
      %v864 = vsel %vm390, %v824, 0
      %v867 = vsel %vm390, %v825, 0
      %v870 = vsel %vm390, %v826, 0
      %v873 = vsel %vm390, %v827, 0
      %v876 = vsel %vm390, %v828, 0
      %v879 = vsel %vm390, %v829, 0
      %v882 = vsel %vm390, %v830, 0
      %v885 = vsel %vm390, %v831, 0
      %v888 = vsel %vm390, %v832, 0
      %v891 = vsel %vm390, %v833, 0
      %v894 = vsel %vm390, %v834, 0
      %v897 = vsel %vm390, %v835, 0
      %v900 = vsel %vm390, %v836, 0
      %v903 = vsel %vm390, %v837, 0
      %v906 = vsel %vm390, %v838, 0
      %v909 = vsel %vm390, %v839, 0
      %911 = vmatprep.subr.bf16.mxu0 0
      %912 = vmatpush1.bf16.msra.mxu0 %v859
      %913 = vmatprep.subr.bf16.mxu0 0
      %914 = vmatpush1.bf16.msra.mxu0 %v860
      %915 = vmatprep.subr.bf16.mxu0 0
      %916 = vmatpush1.bf16.msra.mxu0 0
      %917 = vmatprep.subr.bf16.mxu0 0
      %918 = vmatpush1.bf16.msra.mxu0 0
      %919 = vmatprep.subr.bf16.mxu0 0
      %920 = vmatpush1.bf16.msra.mxu0 0
      %921 = vmatprep.subr.bf16.mxu0 0
      %922 = vmatpush1.bf16.msra.mxu0 0
      %923 = vmatprep.subr.bf16.mxu0 0
      %924 = vmatpush1.bf16.msra.mxu0 0
      %925 = vmatprep.subr.bf16.mxu0 0
      %926 = vmatpush1.bf16.msra.mxu0 0
      %927 = vmatprep.subr.bf16.mxu0 0
      %928 = vmatpush1.bf16.msra.mxu0 0
      %929 = vmatprep.subr.bf16.mxu0 0
      %930 = vmatpush1.bf16.msra.mxu0 0
      %931 = vmatprep.subr.bf16.mxu0 0
      %932 = vmatpush1.bf16.msra.mxu0 0
      %933 = vmatprep.subr.bf16.mxu0 0
      %934 = vmatpush1.bf16.msra.mxu0 0
      %935 = vmatprep.subr.bf16.mxu0 0
      %936 = vmatpush1.bf16.msra.mxu0 0
      %937 = vmatprep.subr.bf16.mxu0 0
      %938 = vmatpush1.bf16.msra.mxu0 0
      %939 = vmatprep.subr.bf16.mxu0 0
      %940 = vmatpush1.bf16.msra.mxu0 0
      %941 = vmatprep.subr.bf16.mxu0 0
      %942 = vmatpush1.bf16.msra.mxu0 0
      %943 = vmatprep.mubr.bf16.mxu0 0
      %944 = vmatmul.mubr.bf16.gmra.mrb[0].mxu0 %v864
      %v945 = vpop.f32.mrb[0].mxu0
      %v946 = vadd.f32 %v849, %v945
      %v947 = vpop.f32.mrb[0].mxu0
      %v948 = vpop.f32.mrb[0].mxu0
      %v949 = vadd.f32 %v849, %v948
      %v950 = vpop.f32.mrb[0].mxu0
      %951 = vmatprep.mubr.bf16.mxu0 0
      %952 = vmatmul.mubr.bf16.gmra.mrb[0].mxu0 %v867
      %v953 = vpop.f32.mrb[0].mxu0
      %v954 = vadd.f32 %v849, %v953
      %v955 = vpop.f32.mrb[0].mxu0
      %v956 = vpop.f32.mrb[0].mxu0
      %v957 = vadd.f32 %v849, %v956
      %v958 = vpop.f32.mrb[0].mxu0
      %959 = vmatprep.mubr.bf16.mxu0 0
      %960 = vmatmul.mubr.bf16.gmra.mrb[0].mxu0 %v870
      %v961 = vpop.f32.mrb[0].mxu0
      %v962 = vadd.f32 %v849, %v961
      %v963 = vpop.f32.mrb[0].mxu0
      %v964 = vpop.f32.mrb[0].mxu0
      %v965 = vadd.f32 %v849, %v964
      %v966 = vpop.f32.mrb[0].mxu0
      %967 = vmatprep.mubr.bf16.mxu0 0
      %968 = vmatmul.mubr.bf16.gmra.mrb[0].mxu0 %v873
      %v969 = vpop.f32.mrb[0].mxu0
      %v970 = vadd.f32 %v849, %v969
      %v971 = vpop.f32.mrb[0].mxu0
      %v972 = vpop.f32.mrb[0].mxu0
      %v973 = vadd.f32 %v849, %v972
      %v974 = vpop.f32.mrb[0].mxu0
      %975 = vmatprep.mubr.bf16.mxu0 0
      %976 = vmatmul.mubr.bf16.gmra.mrb[0].mxu0 %v876
      %v977 = vpop.f32.mrb[0].mxu0
      %v978 = vadd.f32 %v849, %v977
      %v979 = vpop.f32.mrb[0].mxu0
      %v980 = vpop.f32.mrb[0].mxu0
      %v981 = vadd.f32 %v849, %v980
      %v982 = vpop.f32.mrb[0].mxu0
      %983 = vmatprep.mubr.bf16.mxu0 0
      %984 = vmatmul.mubr.bf16.gmra.mrb[0].mxu0 %v879
      %v985 = vpop.f32.mrb[0].mxu0
      %v986 = vadd.f32 %v849, %v985
      %v987 = vpop.f32.mrb[0].mxu0
      %v988 = vpop.f32.mrb[0].mxu0
      %v989 = vadd.f32 %v849, %v988
      %v990 = vpop.f32.mrb[0].mxu0
      %991 = vmatprep.mubr.bf16.mxu0 0
      %992 = vmatmul.mubr.bf16.gmra.mrb[0].mxu0 %v882
      %v993 = vpop.f32.mrb[0].mxu0
      %v994 = vadd.f32 %v849, %v993
      %v995 = vpop.f32.mrb[0].mxu0
      %v996 = vpop.f32.mrb[0].mxu0
      %v997 = vadd.f32 %v849, %v996
      %v998 = vpop.f32.mrb[0].mxu0
      %999 = vmatprep.mubr.bf16.mxu0 0
      %1000 = vmatmul.mubr.bf16.gmra.mrb[0].mxu0 %v885
      %v1001 = vpop.f32.mrb[0].mxu0
      %v1002 = vadd.f32 %v849, %v1001
      %v1003 = vpop.f32.mrb[0].mxu0
      %v1004 = vpop.f32.mrb[0].mxu0
      %v1005 = vadd.f32 %v849, %v1004
      %v1006 = vpop.f32.mrb[0].mxu0
      %1007 = vmatprep.mubr.bf16.mxu0 0
      %1008 = vmatmul.mubr.bf16.gmra.mrb[0].mxu0 %v888
      %v1009 = vpop.f32.mrb[0].mxu0
      %v1010 = vadd.f32 %v849, %v1009
      %v1011 = vpop.f32.mrb[0].mxu0
      %v1012 = vpop.f32.mrb[0].mxu0
      %v1013 = vadd.f32 %v849, %v1012
      %v1014 = vpop.f32.mrb[0].mxu0
      %1015 = vmatprep.mubr.bf16.mxu0 0
      %1016 = vmatmul.mubr.bf16.gmra.mrb[0].mxu0 %v891
      %v1017 = vpop.f32.mrb[0].mxu0
      %v1018 = vadd.f32 %v849, %v1017
      %v1019 = vpop.f32.mrb[0].mxu0
      %v1020 = vpop.f32.mrb[0].mxu0
      %v1021 = vadd.f32 %v849, %v1020
      %v1022 = vpop.f32.mrb[0].mxu0
      %1023 = vmatprep.mubr.bf16.mxu0 0
      %1024 = vmatmul.mubr.bf16.gmra.mrb[0].mxu0 %v894
      %v1025 = vpop.f32.mrb[0].mxu0
      %v1026 = vadd.f32 %v849, %v1025
      %v1027 = vpop.f32.mrb[0].mxu0
      %v1028 = vpop.f32.mrb[0].mxu0
      %v1029 = vadd.f32 %v849, %v1028
      %v1030 = vpop.f32.mrb[0].mxu0
      %1031 = vmatprep.mubr.bf16.mxu0 0
      %1032 = vmatmul.mubr.bf16.gmra.mrb[0].mxu0 %v897
      %v1033 = vpop.f32.mrb[0].mxu0
      %v1034 = vadd.f32 %v849, %v1033
      %v1035 = vpop.f32.mrb[0].mxu0
      %v1036 = vpop.f32.mrb[0].mxu0
      %v1037 = vadd.f32 %v849, %v1036
      %v1038 = vpop.f32.mrb[0].mxu0
      %1039 = vmatprep.mubr.bf16.mxu0 0
      %1040 = vmatmul.mubr.bf16.gmra.mrb[0].mxu0 %v900
      %v1041 = vpop.f32.mrb[0].mxu0
      %v1042 = vadd.f32 %v849, %v1041
      %v1043 = vpop.f32.mrb[0].mxu0
      %v1044 = vpop.f32.mrb[0].mxu0
      %v1045 = vadd.f32 %v849, %v1044
      %v1046 = vpop.f32.mrb[0].mxu0
      %1047 = vmatprep.mubr.bf16.mxu0 0
      %1048 = vmatmul.mubr.bf16.gmra.mrb[0].mxu0 %v903
      %v1049 = vpop.f32.mrb[0].mxu0
      %v1050 = vadd.f32 %v849, %v1049
      %v1051 = vpop.f32.mrb[0].mxu0
      %v1052 = vpop.f32.mrb[0].mxu0
      %v1053 = vadd.f32 %v849, %v1052
      %v1054 = vpop.f32.mrb[0].mxu0
      %1055 = vmatprep.mubr.bf16.mxu0 0
      %1056 = vmatmul.mubr.bf16.gmra.mrb[0].mxu0 %v906
      %v1057 = vpop.f32.mrb[0].mxu0
      %v1058 = vadd.f32 %v849, %v1057
      %v1059 = vpop.f32.mrb[0].mxu0
      %v1060 = vpop.f32.mrb[0].mxu0
      %v1061 = vadd.f32 %v849, %v1060
      %v1062 = vpop.f32.mrb[0].mxu0
      %1063 = vmatprep.mubr.bf16.mxu0 0
      %1064 = vmatmul.mubr.bf16.gmra.mrb[0].mxu0 %v909
      %v1065 = vpop.f32.mrb[0].mxu0
      %v1066 = vadd.f32 %v849, %v1065
      %v1067 = vpop.f32.mrb[0].mxu0
      %v1068 = vpop.f32.mrb[0].mxu0
      %v1069 = vadd.f32 %v849, %v1068
      %v1070 = vpop.f32.mrb[0].mxu0
      %1071 = vdwg.mxu0
      %v1072 = vxor.u32 %v946, 2147483648
      %v1073 = vxor.u32 %v949, 2147483648
      %v1074 = vxor.u32 %v954, 2147483648
      %v1075 = vxor.u32 %v957, 2147483648
      %v1076 = vxor.u32 %v962, 2147483648
      %v1077 = vxor.u32 %v965, 2147483648
      %v1078 = vxor.u32 %v970, 2147483648
      %v1079 = vxor.u32 %v973, 2147483648
      %v1080 = vxor.u32 %v978, 2147483648
      %v1081 = vxor.u32 %v981, 2147483648
      %v1082 = vxor.u32 %v986, 2147483648
      %v1083 = vxor.u32 %v989, 2147483648
      %v1084 = vxor.u32 %v994, 2147483648
      %v1085 = vxor.u32 %v997, 2147483648
      %v1086 = vxor.u32 %v1002, 2147483648
      %v1087 = vxor.u32 %v1005, 2147483648
      %v1088 = vxor.u32 %v1010, 2147483648
      %v1089 = vxor.u32 %v1013, 2147483648
      %v1090 = vxor.u32 %v1018, 2147483648
      %v1091 = vxor.u32 %v1021, 2147483648
      %v1092 = vxor.u32 %v1026, 2147483648
      %v1093 = vxor.u32 %v1029, 2147483648
      %v1094 = vxor.u32 %v1034, 2147483648
      %v1095 = vxor.u32 %v1037, 2147483648
      %v1096 = vxor.u32 %v1042, 2147483648
      %v1097 = vxor.u32 %v1045, 2147483648
      %v1098 = vxor.u32 %v1050, 2147483648
      %v1099 = vxor.u32 %v1053, 2147483648
      %v1100 = vxor.u32 %v1058, 2147483648
      %v1101 = vxor.u32 %v1061, 2147483648
      %v1102 = vxor.u32 %v1066, 2147483648
      %v1103 = vxor.u32 %v1069, 2147483648
      %v1104 = vmul.f32 %v1072, 1.442695
      %v1105 = vpow.pop %v1104
      %v1106 = vmul.f32 %v1073, 1.442695
      %v1107 = vpow.pop %v1106
      %v1108 = vmul.f32 %v1074, 1.442695
      %v1109 = vpow.pop %v1108
      %v1110 = vmul.f32 %v1075, 1.442695
      %v1111 = vpow.pop %v1110
      %v1112 = vmul.f32 %v1076, 1.442695
      %v1113 = vpow.pop %v1112
      %v1114 = vmul.f32 %v1077, 1.442695
      %v1115 = vpow.pop %v1114
      %v1116 = vmul.f32 %v1078, 1.442695
      %v1117 = vpow.pop %v1116
      %v1118 = vmul.f32 %v1079, 1.442695
      %v1119 = vpow.pop %v1118
      %v1120 = vmul.f32 %v1080, 1.442695
      %v1121 = vpow.pop %v1120
      %v1122 = vmul.f32 %v1081, 1.442695
      %v1123 = vpow.pop %v1122
      %v1124 = vmul.f32 %v1082, 1.442695
      %v1125 = vpow.pop %v1124
      %v1126 = vmul.f32 %v1083, 1.442695
      %v1127 = vpow.pop %v1126
      %v1128 = vmul.f32 %v1084, 1.442695
      %v1129 = vpow.pop %v1128
      %v1130 = vmul.f32 %v1085, 1.442695
      %v1131 = vpow.pop %v1130
      %v1132 = vmul.f32 %v1086, 1.442695
      %v1133 = vpow.pop %v1132
      %v1134 = vmul.f32 %v1087, 1.442695
      %v1135 = vpow.pop %v1134
      %v1136 = vmul.f32 %v1088, 1.442695
      %v1137 = vpow.pop %v1136
      %v1138 = vmul.f32 %v1089, 1.442695
      %v1139 = vpow.pop %v1138
      %v1140 = vmul.f32 %v1090, 1.442695
      %v1141 = vpow.pop %v1140
      %v1142 = vmul.f32 %v1091, 1.442695
      %v1143 = vpow.pop %v1142
      %v1144 = vmul.f32 %v1092, 1.442695
      %v1145 = vpow.pop %v1144
      %v1146 = vmul.f32 %v1093, 1.442695
      %v1147 = vpow.pop %v1146
      %v1148 = vmul.f32 %v1094, 1.442695
      %v1149 = vpow.pop %v1148
      %v1150 = vmul.f32 %v1095, 1.442695
      %v1151 = vpow.pop %v1150
      %v1152 = vmul.f32 %v1096, 1.442695
      %v1153 = vpow.pop %v1152
      %v1154 = vmul.f32 %v1097, 1.442695
      %v1155 = vpow.pop %v1154
      %v1156 = vmul.f32 %v1098, 1.442695
      %v1157 = vpow.pop %v1156
      %v1158 = vmul.f32 %v1099, 1.442695
      %v1159 = vpow.pop %v1158
      %v1160 = vmul.f32 %v1100, 1.442695
      %v1161 = vpow.pop %v1160
      %v1162 = vmul.f32 %v1101, 1.442695
      %v1163 = vpow.pop %v1162
      %v1164 = vmul.f32 %v1102, 1.442695
      %v1165 = vpow.pop %v1164
      %v1166 = vmul.f32 %v1103, 1.442695
      %v1167 = vpow.pop %v1166
      %v1168 = vadd.f32 %v1105, 1.0
      %v1169 = vadd.f32 %v1107, 1.0
      %v1170 = vadd.f32 %v1109, 1.0
      %v1171 = vadd.f32 %v1111, 1.0
      %v1172 = vadd.f32 %v1113, 1.0
      %v1173 = vadd.f32 %v1115, 1.0
      %v1174 = vadd.f32 %v1117, 1.0
      %v1175 = vadd.f32 %v1119, 1.0
      %v1176 = vadd.f32 %v1121, 1.0
      %v1177 = vadd.f32 %v1123, 1.0
      %v1178 = vadd.f32 %v1125, 1.0
      %v1179 = vadd.f32 %v1127, 1.0
      %v1180 = vadd.f32 %v1129, 1.0
      %v1181 = vadd.f32 %v1131, 1.0
      %v1182 = vadd.f32 %v1133, 1.0
      %v1183 = vadd.f32 %v1135, 1.0
      %v1184 = vadd.f32 %v1137, 1.0
      %v1185 = vadd.f32 %v1139, 1.0
      %v1186 = vadd.f32 %v1141, 1.0
      %v1187 = vadd.f32 %v1143, 1.0
      %v1188 = vadd.f32 %v1145, 1.0
      %v1189 = vadd.f32 %v1147, 1.0
      %v1190 = vadd.f32 %v1149, 1.0
      %v1191 = vadd.f32 %v1151, 1.0
      %v1192 = vadd.f32 %v1153, 1.0
      %v1193 = vadd.f32 %v1155, 1.0
      %v1194 = vadd.f32 %v1157, 1.0
      %v1195 = vadd.f32 %v1159, 1.0
      %v1196 = vadd.f32 %v1161, 1.0
      %v1197 = vadd.f32 %v1163, 1.0
      %v1198 = vadd.f32 %v1165, 1.0
      %v1199 = vadd.f32 %v1167, 1.0
      %v1200 = vrcp.pop %v1168
      %v1201 = vmul.f32 1.0, %v1200
      %v1202 = vrcp.pop %v1169
      %v1203 = vmul.f32 1.0, %v1202
      %v1204 = vrcp.pop %v1170
      %v1205 = vmul.f32 1.0, %v1204
      %v1206 = vrcp.pop %v1171
      %v1207 = vmul.f32 1.0, %v1206
      %v1208 = vrcp.pop %v1172
      %v1209 = vmul.f32 1.0, %v1208
      %v1210 = vrcp.pop %v1173
      %v1211 = vmul.f32 1.0, %v1210
      %v1212 = vrcp.pop %v1174
      %v1213 = vmul.f32 1.0, %v1212
      %v1214 = vrcp.pop %v1175
      %v1215 = vmul.f32 1.0, %v1214
      %v1216 = vrcp.pop %v1176
      %v1217 = vmul.f32 1.0, %v1216
      %v1218 = vrcp.pop %v1177
      %v1219 = vmul.f32 1.0, %v1218
      %v1220 = vrcp.pop %v1178
      %v1221 = vmul.f32 1.0, %v1220
      %v1222 = vrcp.pop %v1179
      %v1223 = vmul.f32 1.0, %v1222
      %v1224 = vrcp.pop %v1180
      %v1225 = vmul.f32 1.0, %v1224
      %v1226 = vrcp.pop %v1181
      %v1227 = vmul.f32 1.0, %v1226
      %v1228 = vrcp.pop %v1182
      %v1229 = vmul.f32 1.0, %v1228
      %v1230 = vrcp.pop %v1183
      %v1231 = vmul.f32 1.0, %v1230
      %v1232 = vrcp.pop %v1184
      %v1233 = vmul.f32 1.0, %v1232
      %v1234 = vrcp.pop %v1185
      %v1235 = vmul.f32 1.0, %v1234
      %v1236 = vrcp.pop %v1186
      %v1237 = vmul.f32 1.0, %v1236
      %v1238 = vrcp.pop %v1187
      %v1239 = vmul.f32 1.0, %v1238
      %v1240 = vrcp.pop %v1188
      %v1241 = vmul.f32 1.0, %v1240
      %v1242 = vrcp.pop %v1189
      %v1243 = vmul.f32 1.0, %v1242
      %v1244 = vrcp.pop %v1190
      %v1245 = vmul.f32 1.0, %v1244
      %v1246 = vrcp.pop %v1191
      %v1247 = vmul.f32 1.0, %v1246
      %v1248 = vrcp.pop %v1192
      %v1249 = vmul.f32 1.0, %v1248
      %v1250 = vrcp.pop %v1193
      %v1251 = vmul.f32 1.0, %v1250
      %v1252 = vrcp.pop %v1194
      %v1253 = vmul.f32 1.0, %v1252
      %v1254 = vrcp.pop %v1195
      %v1255 = vmul.f32 1.0, %v1254
      %v1256 = vrcp.pop %v1196
      %v1257 = vmul.f32 1.0, %v1256
      %v1258 = vrcp.pop %v1197
      %v1259 = vmul.f32 1.0, %v1258
      %v1260 = vrcp.pop %v1198
      %v1261 = vmul.f32 1.0, %v1260
      %v1262 = vrcp.pop %v1199
      %v1263 = vmul.f32 1.0, %v1262
      %v1264 = vmul.f32 %v946, %v1201
      %v1265 = vmul.f32 %v949, %v1203
      %v1266 = vmul.f32 %v954, %v1205
      %v1267 = vmul.f32 %v957, %v1207
      %v1268 = vmul.f32 %v962, %v1209
      %v1269 = vmul.f32 %v965, %v1211
      %v1270 = vmul.f32 %v970, %v1213
      %v1271 = vmul.f32 %v973, %v1215
      %v1272 = vmul.f32 %v978, %v1217
      %v1273 = vmul.f32 %v981, %v1219
      %v1274 = vmul.f32 %v986, %v1221
      %v1275 = vmul.f32 %v989, %v1223
      %v1276 = vmul.f32 %v994, %v1225
      %v1277 = vmul.f32 %v997, %v1227
      %v1278 = vmul.f32 %v1002, %v1229
      %v1279 = vmul.f32 %v1005, %v1231
      %v1280 = vmul.f32 %v1010, %v1233
      %v1281 = vmul.f32 %v1013, %v1235
      %v1282 = vmul.f32 %v1018, %v1237
      %v1283 = vmul.f32 %v1021, %v1239
      %v1284 = vmul.f32 %v1026, %v1241
      %v1285 = vmul.f32 %v1029, %v1243
      %v1286 = vmul.f32 %v1034, %v1245
      %v1287 = vmul.f32 %v1037, %v1247
      %v1288 = vmul.f32 %v1042, %v1249
      %v1289 = vmul.f32 %v1045, %v1251
      %v1290 = vmul.f32 %v1050, %v1253
      %v1291 = vmul.f32 %v1053, %v1255
      %v1292 = vmul.f32 %v1058, %v1257
      %v1293 = vmul.f32 %v1061, %v1259
      %v1294 = vmul.f32 %v1066, %v1261
      %v1295 = vmul.f32 %v1069, %v1263
      %v1296 = vld [vmem:[#allocation2] sm:$0x1]
      %v1297 = vadd.f32 %v1264, %v1265
      %v1298 = vadd.f32 %v1297, %v1266
      %v1299 = vadd.f32 %v1298, %v1267
      %v1300 = vadd.f32 %v1299, %v1268
      %v1301 = vadd.f32 %v1300, %v1269
      %v1302 = vadd.f32 %v1301, %v1270
      %v1303 = vadd.f32 %v1302, %v1271
      %v1304 = vadd.f32 %v1303, %v1272
      %v1305 = vadd.f32 %v1304, %v1273
      %v1306 = vadd.f32 %v1305, %v1274
      %v1307 = vadd.f32 %v1306, %v1275
      %v1308 = vadd.f32 %v1307, %v1276
      %v1309 = vadd.f32 %v1308, %v1277
      %v1310 = vadd.f32 %v1309, %v1278
      %v1311 = vadd.f32 %v1310, %v1279
      %v1312 = vadd.f32 %v1311, %v1280
      %v1313 = vadd.f32 %v1312, %v1281
      %v1314 = vadd.f32 %v1313, %v1282
      %v1315 = vadd.f32 %v1314, %v1283
      %v1316 = vadd.f32 %v1315, %v1284
      %v1317 = vadd.f32 %v1316, %v1285
      %v1318 = vadd.f32 %v1317, %v1286
      %v1319 = vadd.f32 %v1318, %v1287
      %v1320 = vadd.f32 %v1319, %v1288
      %v1321 = vadd.f32 %v1320, %v1289
      %v1322 = vadd.f32 %v1321, %v1290
      %v1323 = vadd.f32 %v1322, %v1291
      %v1324 = vadd.f32 %v1323, %v1292
      %v1325 = vadd.f32 %v1324, %v1293
      %v1326 = vadd.f32 %v1325, %v1294
      %v1327 = vadd.f32 %v1326, %v1295
      %v1328 = vrot.slane %v1327, 4
      %v1329 = vadd.f32 %v1327, %v1328
      %v1330 = vrot.slane %v1329, 2
      %v1331 = vadd.f32 %v1329, %v1330
      %v1332 = vrot.slane %v1331, 1
      %v1333 = vadd.f32 %v1331, %v1332
      %v1334 = vadd.f32 %v1296, %v1333
      %1335 = vst [vmem:[#allocation2] sm:$0x1] %v1334
      // Predicated region
      $region45: #{combined_efficientnet_forward.2} parent=39 // pred_check
        %p1336 = pneg %p250
      $region46: #{combined_efficientnet_forward.2} parent=39 // pred_check_branch
        %1338 = sbr.rel (%p1336) target = $region48
      $region47: #{combined_efficientnet_forward.2} parent=39 // pred_region
        %v1339 = vld [vmem:[#allocation2] sm:$0x1]
        %v1340 = vmul.f32 %v1339, 0.00390625
        %1341 = vst [vmem:[%s248] sm:$0x1] %v1340
      $region48: #{combined_efficientnet_forward.2} parent=39 // pred_fallthru
        _
      %p1342 = scmp.lt.s32.totalorder %s20, 1
      %s1343 = scalar_select %p1342, %s20, 1
      %s1344 = scalar_lea.vmem %s5, %s1343
      // Predicated region
      $region49: #{combined_efficientnet_forward.2} parent=39 // pred_check
        %p1345 = pneg %p158
      $region50: #{combined_efficientnet_forward.2} parent=39 // pred_check_branch
        %1347 = sbr.rel (%p1345) target = $region52
      $region51: #{combined_efficientnet_forward.2} parent=39 // pred_region
        _
      $region52: #{combined_efficientnet_forward.2} parent=39 // pred_fallthru
        _
    $region40: #{combined_efficientnet_forward.2} parent=5 // pred_fallthru
      _
    %p1348 = scmp.le.s32.totalorder 2, %s11
    // Predicated region
    $region53: #{combined_efficientnet_forward.2} parent=5 // pred_check
      %p1349 = pneg %p1348
    $region54: #{combined_efficientnet_forward.2} parent=5 // pred_check_branch
      %1351 = sbr.rel (%p1349) target = $region56
    $region55: #{combined_efficientnet_forward.2} parent=5 // pred_region
      %s1352 = ssub.s32 %s11, 2
      // Predicated region
      $region57: #{combined_efficientnet_forward.2} parent=55 // pred_check
        %p1353 = pneg %p164
      $region58: #{combined_efficientnet_forward.2} parent=55 // pred_check_branch
        %1355 = sbr.rel (%p1353) target = $region60
      $region59: #{combined_efficientnet_forward.2} parent=55 // pred_region
        %p1356 = scmp.lt.s32.totalorder %s22, 1
        %s1357 = scalar_select %p1356, %s22, 1
        %s1358 = scalar_lea.vmem %s5, %s1357
      $region60: #{combined_efficientnet_forward.2} parent=55 // pred_fallthru
        _
    $region56: #{combined_efficientnet_forward.2} parent=5 // pred_fallthru
      _
  $region6: #{combined_efficientnet_forward.2} parent=0 // loop_footer
    %s15 = sadd.s32 1, %s11
  $region7: #{combined_efficientnet_forward.2} parent=0 // loop_footer_branch
    %10 = sbr.rel target = $region3
  $region8: #{combined_efficientnet_forward.2} parent=0 // loop_exit
    _

// kernel: combined_efficientnet_forward.3
$region0: #{combined_efficientnet_forward.3}
  #allocation0 [shape = 'u32[]', space=smem, size = 0x4, offset = 0x4, fixed_abs, tag = 'smem constant byte address 0x4 - core index']
  #allocation1 [shape = 'u32[144,128]{1,0:T(1,128)}', space=vmem, size = 0x12000, scoped, tag = 'internal scratch']
  %s0 = inlined_call_operand.vmem [shape: bf16[8,128], index: 0, kind: input, shape index: {}]
  %s1 = inlined_call_operand.vmem [shape: bf16[8,8], index: 1, kind: input, shape index: {}]
  %s2 = inlined_call_operand.vmem [shape: bf16[8,256], index: 2, kind: input, shape index: {}]
  %s3 = inlined_call_operand.vmem [shape: f32[1,256], index: 3, kind: input, shape index: {}]
  %s4 = inlined_call_operand.vmem [shape: bf16[256,128], index: 4, kind: input, shape index: {}]
  %s5 = inlined_call_operand.vmem [shape: f32[1,128], index: 5, kind: input, shape index: {}]
  %s6 = inlined_call_operand.vmem [shape: bf16[128,512], index: 6, kind: input, shape index: {}]
  %s7 = inlined_call_operand.vmem [shape: bf16[128,512], index: 7, kind: input, shape index: {}]
  %s8 = inlined_call_operand.vmem [shape: f32[1,512], index: 8, kind: input, shape index: {}]
  %s9 = inlined_call_operand.vmem [shape: bf16[512,128], index: 9, kind: input, shape index: {}]
  %s10 = inlined_call_operand.vmem [shape: f32[1,128], index: 10, kind: input, shape index: {}]
  %s11 = inlined_call_operand.vmem [shape: f32[8,128], index: 11, kind: output, shape index: {}]
  %s12 = sld [smem:[#allocation0]]
  $region54: #{combined_efficientnet_forward.3} parent=0
    _
  %s14 = ssub.s32 1, %s12
  %s15 = scalar_select 0, %s14, %s12
  // Predicated region
  $region2: #{combined_efficientnet_forward.3} parent=0 // pred_check
    _
  $region3: #{combined_efficientnet_forward.3} parent=0 // pred_check_branch
    %17 = sbr.rel (0) target = $region5
  $region4: #{combined_efficientnet_forward.3} parent=0 // pred_region
    _
  $region5: #{combined_efficientnet_forward.3} parent=0 // pred_fallthru
    _
  // Predicated region
  $region6: #{combined_efficientnet_forward.3} parent=0 // pred_check
    _
  $region7: #{combined_efficientnet_forward.3} parent=0 // pred_check_branch
    %19 = sbr.rel (0) target = $region9
  $region8: #{combined_efficientnet_forward.3} parent=0 // pred_region
    _
  $region9: #{combined_efficientnet_forward.3} parent=0 // pred_fallthru
    _
  // Predicated region
  $region10: #{combined_efficientnet_forward.3} parent=0 // pred_check
    _
  $region11: #{combined_efficientnet_forward.3} parent=0 // pred_check_branch
    %21 = sbr.rel (0) target = $region13
  $region12: #{combined_efficientnet_forward.3} parent=0 // pred_region
    _
  $region13: #{combined_efficientnet_forward.3} parent=0 // pred_fallthru
    _
  // Predicated region
  $region14: #{combined_efficientnet_forward.3} parent=0 // pred_check
    _
  $region15: #{combined_efficientnet_forward.3} parent=0 // pred_check_branch
    %23 = sbr.rel (0) target = $region17
  $region16: #{combined_efficientnet_forward.3} parent=0 // pred_region
    _
  $region17: #{combined_efficientnet_forward.3} parent=0 // pred_fallthru
    _
  // Predicated region
  $region18: #{combined_efficientnet_forward.3} parent=0 // pred_check
    _
  $region19: #{combined_efficientnet_forward.3} parent=0 // pred_check_branch
    %25 = sbr.rel (0) target = $region21
  $region20: #{combined_efficientnet_forward.3} parent=0 // pred_region
    _
  $region21: #{combined_efficientnet_forward.3} parent=0 // pred_fallthru
    _
  // Predicated region
  $region22: #{combined_efficientnet_forward.3} parent=0 // pred_check
    _
  $region23: #{combined_efficientnet_forward.3} parent=0 // pred_check_branch
    %27 = sbr.rel (0) target = $region25
  $region24: #{combined_efficientnet_forward.3} parent=0 // pred_region
    _
  $region25: #{combined_efficientnet_forward.3} parent=0 // pred_fallthru
    _
  // Predicated region
  $region26: #{combined_efficientnet_forward.3} parent=0 // pred_check
    _
  $region27: #{combined_efficientnet_forward.3} parent=0 // pred_check_branch
    %29 = sbr.rel (0) target = $region29
  $region28: #{combined_efficientnet_forward.3} parent=0 // pred_region
    _
  $region29: #{combined_efficientnet_forward.3} parent=0 // pred_fallthru
    _
  // Predicated region
  $region30: #{combined_efficientnet_forward.3} parent=0 // pred_check
    _
  $region31: #{combined_efficientnet_forward.3} parent=0 // pred_check_branch
    %31 = sbr.rel (0) target = $region33
  $region32: #{combined_efficientnet_forward.3} parent=0 // pred_region
    _
  $region33: #{combined_efficientnet_forward.3} parent=0 // pred_fallthru
    _
  // Predicated region
  $region34: #{combined_efficientnet_forward.3} parent=0 // pred_check
    _
  $region35: #{combined_efficientnet_forward.3} parent=0 // pred_check_branch
    %33 = sbr.rel (0) target = $region37
  $region36: #{combined_efficientnet_forward.3} parent=0 // pred_region
    _
  $region37: #{combined_efficientnet_forward.3} parent=0 // pred_fallthru
    _
  // Predicated region
  $region38: #{combined_efficientnet_forward.3} parent=0 // pred_check
    _
  $region39: #{combined_efficientnet_forward.3} parent=0 // pred_check_branch
    %35 = sbr.rel (0) target = $region41
  $region40: #{combined_efficientnet_forward.3} parent=0 // pred_region
    _
  $region41: #{combined_efficientnet_forward.3} parent=0 // pred_fallthru
    _
  // Predicated region
  $region42: #{combined_efficientnet_forward.3} parent=0 // pred_check
    _
  $region43: #{combined_efficientnet_forward.3} parent=0 // pred_check_branch
    %37 = sbr.rel (0) target = $region45
  $region44: #{combined_efficientnet_forward.3} parent=0 // pred_region
    _
  $region45: #{combined_efficientnet_forward.3} parent=0 // pred_fallthru
    _
  %v39 = vld [vmem:[%s1] sm:$0xf]
  %v40 = vld [vmem:[%s2] sm:$0xff]
  %v41 = vld [vmem:[%s3] sm:$0x3]
  %v43 = vlaneseq
  %v44 = vshrl.u32 %v43, 7
  %v45 = vsub.s32 0, %v44
  %v46 = vrot.slane %v41, %v45
  %v47 = vlaneseq
  %v48 = vshrl.u32 %v47, 7
  %v49 = vsub.s32 1, %v48
  %v50 = vrot.slane %v41, %v49
  %v54 = vunpack.c.l.b16 %v40
  %v55 = vunpack.c.h.b16 %v40
  %v56 = vpack.c.b16 %v54, %v54
  %v57 = vpack.c.b16 %v55, %v55
  %vm58 = vcmask 64512
  %v60 = vsel %vm58, %v39, 0
  %vm62 = vcmask 1043456
  %v64 = vsel %vm62, %v56, 0
  %v67 = vsel %vm62, %v57, 0
  %69 = vmatprep.subr.bf16.mxu0 %v67
  %70 = vmatpush1.bf16.msra.mxu0 %v64
  %71 = vmatprep.subr.bf16.mxu0 0
  %72 = vmatpush1.bf16.msra.mxu0 0
  %73 = vmatprep.subr.bf16.mxu0 0
  %74 = vmatpush1.bf16.msra.mxu0 0
  %75 = vmatprep.subr.bf16.mxu0 0
  %76 = vmatpush1.bf16.msra.mxu0 0
  %77 = vmatprep.subr.bf16.mxu0 0
  %78 = vmatpush1.bf16.msra.mxu0 0
  %79 = vmatprep.subr.bf16.mxu0 0
  %80 = vmatpush1.bf16.msra.mxu0 0
  %81 = vmatprep.subr.bf16.mxu0 0
  %82 = vmatpush1.bf16.msra.mxu0 0
  %83 = vmatprep.subr.bf16.mxu0 0
  %84 = vmatpush1.bf16.msra.mxu0 0
  %85 = vmatprep.subr.bf16.mxu0 0
  %86 = vmatpush1.bf16.msra.mxu0 0
  %87 = vmatprep.subr.bf16.mxu0 0
  %88 = vmatpush1.bf16.msra.mxu0 0
  %89 = vmatprep.subr.bf16.mxu0 0
  %90 = vmatpush1.bf16.msra.mxu0 0
  %91 = vmatprep.subr.bf16.mxu0 0
  %92 = vmatpush1.bf16.msra.mxu0 0
  %93 = vmatprep.subr.bf16.mxu0 0
  %94 = vmatpush1.bf16.msra.mxu0 0
  %95 = vmatprep.subr.bf16.mxu0 0
  %96 = vmatpush1.bf16.msra.mxu0 0
  %97 = vmatprep.subr.bf16.mxu0 0
  %98 = vmatpush1.bf16.msra.mxu0 0
  %99 = vmatprep.subr.bf16.mxu0 0
  %100 = vmatpush1.bf16.msra.mxu0 0
  %101 = vmatprep.mubr.bf16.mxu0 0
  %102 = vmatmul.mubr.bf16.gmra.mrb[0].mxu0 %v60
  %v103 = vpop.f32.mrb[0].mxu0
  %v104 = vadd.f32 %v46, %v103
  %v105 = vpop.f32.mrb[0].mxu0
  %v106 = vadd.f32 %v50, %v105
  %v107 = vpop.f32.mrb[0].mxu0
  %v108 = vpop.f32.mrb[0].mxu0
  %109 = vdwg.mxu0
  %v110 = vmax.f32 %v104, 0.0
  %v111 = vmax.f32 %v106, 0.0
  %v112 = vpack.c.bf16 %v110, %v110
  %v113 = vpack.c.bf16 %v111, %v111
  %v114 = vld [vmem:[%s4] sm:$0xf]
  %v115 = vld [vmem:[%s4 + $0x4] sm:$0xf]
  %v116 = vld [vmem:[%s4 + $0x8] sm:$0xf]
  %v117 = vld [vmem:[%s4 + $0xc] sm:$0xf]
  %v118 = vld [vmem:[%s4 + $0x10] sm:$0xf]
  %v119 = vld [vmem:[%s4 + $0x14] sm:$0xf]
  %v120 = vld [vmem:[%s4 + $0x18] sm:$0xf]
  %v121 = vld [vmem:[%s4 + $0x1c] sm:$0xf]
  %v122 = vld [vmem:[%s4 + $0x20] sm:$0xf]
  %v123 = vld [vmem:[%s4 + $0x24] sm:$0xf]
  %v124 = vld [vmem:[%s4 + $0x28] sm:$0xf]
  %v125 = vld [vmem:[%s4 + $0x2c] sm:$0xf]
  %v126 = vld [vmem:[%s4 + $0x30] sm:$0xf]
  %v127 = vld [vmem:[%s4 + $0x34] sm:$0xf]
  %v128 = vld [vmem:[%s4 + $0x38] sm:$0xf]
  %v129 = vld [vmem:[%s4 + $0x3c] sm:$0xf]
  %v130 = vld [vmem:[%s4 + $0x40] sm:$0xf]
  %v131 = vld [vmem:[%s4 + $0x44] sm:$0xf]
  %v132 = vld [vmem:[%s4 + $0x48] sm:$0xf]
  %v133 = vld [vmem:[%s4 + $0x4c] sm:$0xf]
  %v134 = vld [vmem:[%s4 + $0x50] sm:$0xf]
  %v135 = vld [vmem:[%s4 + $0x54] sm:$0xf]
  %v136 = vld [vmem:[%s4 + $0x58] sm:$0xf]
  %v137 = vld [vmem:[%s4 + $0x5c] sm:$0xf]
  %v138 = vld [vmem:[%s4 + $0x60] sm:$0xf]
  %v139 = vld [vmem:[%s4 + $0x64] sm:$0xf]
  %v140 = vld [vmem:[%s4 + $0x68] sm:$0xf]
  %v141 = vld [vmem:[%s4 + $0x6c] sm:$0xf]
  %v142 = vld [vmem:[%s4 + $0x70] sm:$0xf]
  %v143 = vld [vmem:[%s4 + $0x74] sm:$0xf]
  %v144 = vld [vmem:[%s4 + $0x78] sm:$0xf]
  %v145 = vld [vmem:[%s4 + $0x7c] sm:$0xf]
  %v146 = vld [vmem:[%s5] sm:$0x1]
  %v148 = vlaneseq
  %v149 = vshrl.u32 %v148, 7
  %v150 = vsub.s32 0, %v149
  %v151 = vrot.slane %v146, %v150
  %v185 = vunpack.c.l.b16 %v114
  %v186 = vunpack.c.l.b16 %v115
  %v187 = vunpack.c.l.b16 %v116
  %v188 = vunpack.c.l.b16 %v117
  %v189 = vunpack.c.l.b16 %v118
  %v190 = vunpack.c.l.b16 %v119
  %v191 = vunpack.c.l.b16 %v120
  %v192 = vunpack.c.l.b16 %v121
  %v193 = vunpack.c.l.b16 %v122
  %v194 = vunpack.c.l.b16 %v123
  %v195 = vunpack.c.l.b16 %v124
  %v196 = vunpack.c.l.b16 %v125
  %v197 = vunpack.c.l.b16 %v126
  %v198 = vunpack.c.l.b16 %v127
  %v199 = vunpack.c.l.b16 %v128
  %v200 = vunpack.c.l.b16 %v129
  %v201 = vunpack.c.l.b16 %v130
  %v202 = vunpack.c.l.b16 %v131
  %v203 = vunpack.c.l.b16 %v132
  %v204 = vunpack.c.l.b16 %v133
  %v205 = vunpack.c.l.b16 %v134
  %v206 = vunpack.c.l.b16 %v135
  %v207 = vunpack.c.l.b16 %v136
  %v208 = vunpack.c.l.b16 %v137
  %v209 = vunpack.c.l.b16 %v138
  %v210 = vunpack.c.l.b16 %v139
  %v211 = vunpack.c.l.b16 %v140
  %v212 = vunpack.c.l.b16 %v141
  %v213 = vunpack.c.l.b16 %v142
  %v214 = vunpack.c.l.b16 %v143
  %v215 = vunpack.c.l.b16 %v144
  %v216 = vunpack.c.l.b16 %v145
  %v217 = vpack.c.b16 %v186, %v185
  %v218 = vpack.c.b16 %v188, %v187
  %v219 = vpack.c.b16 %v190, %v189
  %v220 = vpack.c.b16 %v192, %v191
  %v221 = vpack.c.b16 %v194, %v193
  %v222 = vpack.c.b16 %v196, %v195
  %v223 = vpack.c.b16 %v198, %v197
  %v224 = vpack.c.b16 %v200, %v199
  %v225 = vpack.c.b16 %v202, %v201
  %v226 = vpack.c.b16 %v204, %v203
  %v227 = vpack.c.b16 %v206, %v205
  %v228 = vpack.c.b16 %v208, %v207
  %v229 = vpack.c.b16 %v210, %v209
  %v230 = vpack.c.b16 %v212, %v211
  %v231 = vpack.c.b16 %v214, %v213
  %v232 = vpack.c.b16 %v216, %v215
  %249 = vmatprep.subr.bf16.mxu0 0
  %250 = vmatpush1.bf16.msra.mxu0 %v217
  %251 = vmatprep.subr.bf16.mxu0 0
  %252 = vmatpush1.bf16.msra.mxu0 %v218
  %253 = vmatprep.subr.bf16.mxu0 0
  %254 = vmatpush1.bf16.msra.mxu0 %v219
  %255 = vmatprep.subr.bf16.mxu0 0
  %256 = vmatpush1.bf16.msra.mxu0 %v220
  %257 = vmatprep.subr.bf16.mxu0 0
  %258 = vmatpush1.bf16.msra.mxu0 %v221
  %259 = vmatprep.subr.bf16.mxu0 0
  %260 = vmatpush1.bf16.msra.mxu0 %v222
  %261 = vmatprep.subr.bf16.mxu0 0
  %262 = vmatpush1.bf16.msra.mxu0 %v223
  %263 = vmatprep.subr.bf16.mxu0 0
  %264 = vmatpush1.bf16.msra.mxu0 %v224
  %265 = vmatprep.subr.bf16.mxu0 0
  %266 = vmatpush1.bf16.msra.mxu0 %v225
  %267 = vmatprep.subr.bf16.mxu0 0
  %268 = vmatpush1.bf16.msra.mxu0 %v226
  %269 = vmatprep.subr.bf16.mxu0 0
  %270 = vmatpush1.bf16.msra.mxu0 %v227
  %271 = vmatprep.subr.bf16.mxu0 0
  %272 = vmatpush1.bf16.msra.mxu0 %v228
  %273 = vmatprep.subr.bf16.mxu0 0
  %274 = vmatpush1.bf16.msra.mxu0 %v229
  %275 = vmatprep.subr.bf16.mxu0 0
  %276 = vmatpush1.bf16.msra.mxu0 %v230
  %277 = vmatprep.subr.bf16.mxu0 0
  %278 = vmatpush1.bf16.msra.mxu0 %v231
  %279 = vmatprep.subr.bf16.mxu0 0
  %280 = vmatpush1.bf16.msra.mxu0 %v232
  %281 = vmatprep.mubr.bf16.mxu0 %v113
  %282 = vmatmul.mubr.bf16.gmra.mrb[0].mxu0 %v112
  %v283 = vpop.f32.mrb[0].mxu0
  %v284 = vadd.f32 %v151, %v283
  %v285 = vpop.f32.mrb[0].mxu0
  %v286 = vpop.f32.mrb[0].mxu0
  %v287 = vpop.f32.mrb[0].mxu0
  %288 = vdwg.mxu0
  %v289 = vmax.f32 %v284, 0.0
  %v290 = vld [vmem:[%s0] sm:$0xf]
  %v291 = vld [vmem:[%s6] sm:$0xff]
  %v292 = vld [vmem:[%s6 + $0x8] sm:$0xff]
  %v293 = vld [vmem:[%s6 + $0x10] sm:$0xff]
  %v294 = vld [vmem:[%s6 + $0x18] sm:$0xff]
  %v295 = vld [vmem:[%s6 + $0x20] sm:$0xff]
  %v296 = vld [vmem:[%s6 + $0x28] sm:$0xff]
  %v297 = vld [vmem:[%s6 + $0x30] sm:$0xff]
  %v298 = vld [vmem:[%s6 + $0x38] sm:$0xff]
  %v299 = vld [vmem:[%s6 + $0x40] sm:$0xff]
  %v300 = vld [vmem:[%s6 + $0x48] sm:$0xff]
  %v301 = vld [vmem:[%s6 + $0x50] sm:$0xff]
  %v302 = vld [vmem:[%s6 + $0x58] sm:$0xff]
  %v303 = vld [vmem:[%s6 + $0x60] sm:$0xff]
  %v304 = vld [vmem:[%s6 + $0x68] sm:$0xff]
  %v305 = vld [vmem:[%s6 + $0x70] sm:$0xff]
  %v306 = vld [vmem:[%s6 + $0x78] sm:$0xff]
  %v307 = vld [vmem:[%s6 + $0x80] sm:$0xff]
  %v308 = vld [vmem:[%s6 + $0x88] sm:$0xff]
  %v309 = vld [vmem:[%s6 + $0x90] sm:$0xff]
  %v310 = vld [vmem:[%s6 + $0x98] sm:$0xff]
  %v311 = vld [vmem:[%s6 + $0xa0] sm:$0xff]
  %v312 = vld [vmem:[%s6 + $0xa8] sm:$0xff]
  %v313 = vld [vmem:[%s6 + $0xb0] sm:$0xff]
  %v314 = vld [vmem:[%s6 + $0xb8] sm:$0xff]
  %v315 = vld [vmem:[%s6 + $0xc0] sm:$0xff]
  %v316 = vld [vmem:[%s6 + $0xc8] sm:$0xff]
  %v317 = vld [vmem:[%s6 + $0xd0] sm:$0xff]
  %v318 = vld [vmem:[%s6 + $0xd8] sm:$0xff]
  %v319 = vld [vmem:[%s6 + $0xe0] sm:$0xff]
  %v320 = vld [vmem:[%s6 + $0xe8] sm:$0xff]
  %v321 = vld [vmem:[%s6 + $0xf0] sm:$0xff]
  %v322 = vld [vmem:[%s6 + $0xf8] sm:$0xff]
  %v323 = vpack.c.bf16 %v289, %v289
  %v324 = vld [vmem:[%s7] sm:$0xff]
  %v325 = vld [vmem:[%s7 + $0x8] sm:$0xff]
  %v326 = vld [vmem:[%s7 + $0x10] sm:$0xff]
  %v327 = vld [vmem:[%s7 + $0x18] sm:$0xff]
  %v328 = vld [vmem:[%s7 + $0x20] sm:$0xff]
  %v329 = vld [vmem:[%s7 + $0x28] sm:$0xff]
  %v330 = vld [vmem:[%s7 + $0x30] sm:$0xff]
  %v331 = vld [vmem:[%s7 + $0x38] sm:$0xff]
  %v332 = vld [vmem:[%s7 + $0x40] sm:$0xff]
  %v333 = vld [vmem:[%s7 + $0x48] sm:$0xff]
  %v334 = vld [vmem:[%s7 + $0x50] sm:$0xff]
  %v335 = vld [vmem:[%s7 + $0x58] sm:$0xff]
  %v336 = vld [vmem:[%s7 + $0x60] sm:$0xff]
  %v337 = vld [vmem:[%s7 + $0x68] sm:$0xff]
  %v338 = vld [vmem:[%s7 + $0x70] sm:$0xff]
  %v339 = vld [vmem:[%s7 + $0x78] sm:$0xff]
  %v340 = vld [vmem:[%s7 + $0x80] sm:$0xff]
  %v341 = vld [vmem:[%s7 + $0x88] sm:$0xff]
  %v342 = vld [vmem:[%s7 + $0x90] sm:$0xff]
  %v343 = vld [vmem:[%s7 + $0x98] sm:$0xff]
  %v344 = vld [vmem:[%s7 + $0xa0] sm:$0xff]
  %v345 = vld [vmem:[%s7 + $0xa8] sm:$0xff]
  %v346 = vld [vmem:[%s7 + $0xb0] sm:$0xff]
  %v347 = vld [vmem:[%s7 + $0xb8] sm:$0xff]
  %v348 = vld [vmem:[%s7 + $0xc0] sm:$0xff]
  %v349 = vld [vmem:[%s7 + $0xc8] sm:$0xff]
  %v350 = vld [vmem:[%s7 + $0xd0] sm:$0xff]
  %v351 = vld [vmem:[%s7 + $0xd8] sm:$0xff]
  %v352 = vld [vmem:[%s7 + $0xe0] sm:$0xff]
  %v353 = vld [vmem:[%s7 + $0xe8] sm:$0xff]
  %v354 = vld [vmem:[%s7 + $0xf0] sm:$0xff]
  %v355 = vld [vmem:[%s7 + $0xf8] sm:$0xff]
  %v388 = vunpack.c.l.b16 %v324
  %v389 = vunpack.c.h.b16 %v324
  %v390 = vunpack.c.l.b16 %v325
  %v391 = vunpack.c.h.b16 %v325
  %v392 = vunpack.c.l.b16 %v326
  %v393 = vunpack.c.h.b16 %v326
  %v394 = vunpack.c.l.b16 %v327
  %v395 = vunpack.c.h.b16 %v327
  %v396 = vunpack.c.l.b16 %v328
  %v397 = vunpack.c.h.b16 %v328
  %v398 = vunpack.c.l.b16 %v329
  %v399 = vunpack.c.h.b16 %v329
  %v400 = vunpack.c.l.b16 %v330
  %v401 = vunpack.c.h.b16 %v330
  %v402 = vunpack.c.l.b16 %v331
  %v403 = vunpack.c.h.b16 %v331
  %v404 = vunpack.c.l.b16 %v332
  %v405 = vunpack.c.h.b16 %v332
  %v406 = vunpack.c.l.b16 %v333
  %v407 = vunpack.c.h.b16 %v333
  %v408 = vunpack.c.l.b16 %v334
  %v409 = vunpack.c.h.b16 %v334
  %v410 = vunpack.c.l.b16 %v335
  %v411 = vunpack.c.h.b16 %v335
  %v412 = vunpack.c.l.b16 %v336
  %v413 = vunpack.c.h.b16 %v336
  %v414 = vunpack.c.l.b16 %v337
  %v415 = vunpack.c.h.b16 %v337
  %v416 = vunpack.c.l.b16 %v338
  %v417 = vunpack.c.h.b16 %v338
  %v418 = vunpack.c.l.b16 %v339
  %v419 = vunpack.c.h.b16 %v339
  %v420 = vunpack.c.l.b16 %v340
  %v421 = vunpack.c.h.b16 %v340
  %v422 = vunpack.c.l.b16 %v341
  %v423 = vunpack.c.h.b16 %v341
  %v424 = vunpack.c.l.b16 %v342
  %v425 = vunpack.c.h.b16 %v342
  %v426 = vunpack.c.l.b16 %v343
  %v427 = vunpack.c.h.b16 %v343
  %v428 = vunpack.c.l.b16 %v344
  %v429 = vunpack.c.h.b16 %v344
  %v430 = vunpack.c.l.b16 %v345
  %v431 = vunpack.c.h.b16 %v345
  %v432 = vunpack.c.l.b16 %v346
  %v433 = vunpack.c.h.b16 %v346
  %v434 = vunpack.c.l.b16 %v347
  %v435 = vunpack.c.h.b16 %v347
  %v436 = vunpack.c.l.b16 %v348
  %v437 = vunpack.c.h.b16 %v348
  %v438 = vunpack.c.l.b16 %v349
  %v439 = vunpack.c.h.b16 %v349
  %v440 = vunpack.c.l.b16 %v350
  %v441 = vunpack.c.h.b16 %v350
  %v442 = vunpack.c.l.b16 %v351
  %v443 = vunpack.c.h.b16 %v351
  %v444 = vunpack.c.l.b16 %v352
  %v445 = vunpack.c.h.b16 %v352
  %v446 = vunpack.c.l.b16 %v353
  %v447 = vunpack.c.h.b16 %v353
  %v448 = vunpack.c.l.b16 %v354
  %v449 = vunpack.c.h.b16 %v354
  %v450 = vunpack.c.l.b16 %v355
  %v451 = vunpack.c.h.b16 %v355
  %v452 = vpack.c.b16 %v392, %v388
  %v453 = vpack.c.b16 %v393, %v389
  %v454 = vpack.c.b16 %v394, %v390
  %v455 = vpack.c.b16 %v395, %v391
  %v456 = vpack.c.b16 %v400, %v396
  %v457 = vpack.c.b16 %v401, %v397
  %v458 = vpack.c.b16 %v402, %v398
  %v459 = vpack.c.b16 %v403, %v399
  %v460 = vpack.c.b16 %v408, %v404
  %v461 = vpack.c.b16 %v409, %v405
  %v462 = vpack.c.b16 %v410, %v406
  %v463 = vpack.c.b16 %v411, %v407
  %v464 = vpack.c.b16 %v416, %v412
  %v465 = vpack.c.b16 %v417, %v413
  %v466 = vpack.c.b16 %v418, %v414
  %v467 = vpack.c.b16 %v419, %v415
  %v468 = vpack.c.b16 %v424, %v420
  %v469 = vpack.c.b16 %v425, %v421
  %v470 = vpack.c.b16 %v426, %v422
  %v471 = vpack.c.b16 %v427, %v423
  %v472 = vpack.c.b16 %v432, %v428
  %v473 = vpack.c.b16 %v433, %v429
  %v474 = vpack.c.b16 %v434, %v430
  %v475 = vpack.c.b16 %v435, %v431
  %v476 = vpack.c.b16 %v440, %v436
  %v477 = vpack.c.b16 %v441, %v437
  %v478 = vpack.c.b16 %v442, %v438
  %v479 = vpack.c.b16 %v443, %v439
  %v480 = vpack.c.b16 %v448, %v444
  %v481 = vpack.c.b16 %v449, %v445
  %v482 = vpack.c.b16 %v450, %v446
  %v483 = vpack.c.b16 %v451, %v447
  %516 = vmatprep.subr.bf16.mxu0 %v453
  %517 = vmatpush1.bf16.msra.mxu0 %v452
  %518 = vmatprep.subr.bf16.mxu0 %v457
  %519 = vmatpush1.bf16.msra.mxu0 %v456
  %520 = vmatprep.subr.bf16.mxu0 %v461
  %521 = vmatpush1.bf16.msra.mxu0 %v460
  %522 = vmatprep.subr.bf16.mxu0 %v465
  %523 = vmatpush1.bf16.msra.mxu0 %v464
  %524 = vmatprep.subr.bf16.mxu0 %v469
  %525 = vmatpush1.bf16.msra.mxu0 %v468
  %526 = vmatprep.subr.bf16.mxu0 %v473
  %527 = vmatpush1.bf16.msra.mxu0 %v472
  %528 = vmatprep.subr.bf16.mxu0 %v477
  %529 = vmatpush1.bf16.msra.mxu0 %v476
  %530 = vmatprep.subr.bf16.mxu0 %v481
  %531 = vmatpush1.bf16.msra.mxu0 %v480
  %532 = vmatprep.subr.bf16.mxu0 0
  %533 = vmatpush1.bf16.msra.mxu0 0
  %534 = vmatprep.subr.bf16.mxu0 0
  %535 = vmatpush1.bf16.msra.mxu0 0
  %536 = vmatprep.subr.bf16.mxu0 0
  %537 = vmatpush1.bf16.msra.mxu0 0
  %538 = vmatprep.subr.bf16.mxu0 0
  %539 = vmatpush1.bf16.msra.mxu0 0
  %540 = vmatprep.subr.bf16.mxu0 0
  %541 = vmatpush1.bf16.msra.mxu0 0
  %542 = vmatprep.subr.bf16.mxu0 0
  %543 = vmatpush1.bf16.msra.mxu0 0
  %544 = vmatprep.subr.bf16.mxu0 0
  %545 = vmatpush1.bf16.msra.mxu0 0
  %546 = vmatprep.subr.bf16.mxu0 0
  %547 = vmatpush1.bf16.msra.mxu0 0
  %548 = vmatprep.mubr.bf16.mxu0 0
  %549 = vmatmul.mubr.bf16.gmra.mrb[0].mxu0 %v323
  %v550 = vpop.f32.mrb[0].mxu0
  %v551 = vadd.f32 0.0, %v550
  %v552 = vpop.f32.mrb[0].mxu0
  %v553 = vadd.f32 0.0, %v552
  %v554 = vpop.f32.mrb[0].mxu0
  %v555 = vpop.f32.mrb[0].mxu0
  %556 = vdwg.mxu0
  %557 = vmatprep.subr.bf16.mxu0 %v455
  %558 = vmatpush1.bf16.msra.mxu0 %v454
  %559 = vmatprep.subr.bf16.mxu0 %v459
  %560 = vmatpush1.bf16.msra.mxu0 %v458
  %561 = vmatprep.subr.bf16.mxu0 %v463
  %562 = vmatpush1.bf16.msra.mxu0 %v462
  %563 = vmatprep.subr.bf16.mxu0 %v467
  %564 = vmatpush1.bf16.msra.mxu0 %v466
  %565 = vmatprep.subr.bf16.mxu0 %v471
  %566 = vmatpush1.bf16.msra.mxu0 %v470
  %567 = vmatprep.subr.bf16.mxu0 %v475
  %568 = vmatpush1.bf16.msra.mxu0 %v474
  %569 = vmatprep.subr.bf16.mxu0 %v479
  %570 = vmatpush1.bf16.msra.mxu0 %v478
  %571 = vmatprep.subr.bf16.mxu0 %v483
  %572 = vmatpush1.bf16.msra.mxu0 %v482
  %573 = vmatprep.subr.bf16.mxu0 0
  %574 = vmatpush1.bf16.msra.mxu0 0
  %575 = vmatprep.subr.bf16.mxu0 0
  %576 = vmatpush1.bf16.msra.mxu0 0
  %577 = vmatprep.subr.bf16.mxu0 0
  %578 = vmatpush1.bf16.msra.mxu0 0
  %579 = vmatprep.subr.bf16.mxu0 0
  %580 = vmatpush1.bf16.msra.mxu0 0
  %581 = vmatprep.subr.bf16.mxu0 0
  %582 = vmatpush1.bf16.msra.mxu0 0
  %583 = vmatprep.subr.bf16.mxu0 0
  %584 = vmatpush1.bf16.msra.mxu0 0
  %585 = vmatprep.subr.bf16.mxu0 0
  %586 = vmatpush1.bf16.msra.mxu0 0
  %587 = vmatprep.subr.bf16.mxu0 0
  %588 = vmatpush1.bf16.msra.mxu0 0
  %589 = vmatprep.mubr.bf16.mxu0 0
  %590 = vmatmul.mubr.bf16.gmra.mrb[0].mxu0 %v323
  %v591 = vpop.f32.mrb[0].mxu0
  %v592 = vadd.f32 0.0, %v591
  %v593 = vpop.f32.mrb[0].mxu0
  %v594 = vadd.f32 0.0, %v593
  %v595 = vpop.f32.mrb[0].mxu0
  %v596 = vpop.f32.mrb[0].mxu0
  %597 = vdwg.mxu0
  %v630 = vunpack.c.l.b16 %v291
  %v631 = vunpack.c.h.b16 %v291
  %v632 = vunpack.c.l.b16 %v292
  %v633 = vunpack.c.h.b16 %v292
  %v634 = vunpack.c.l.b16 %v293
  %v635 = vunpack.c.h.b16 %v293
  %v636 = vunpack.c.l.b16 %v294
  %v637 = vunpack.c.h.b16 %v294
  %v638 = vunpack.c.l.b16 %v295
  %v639 = vunpack.c.h.b16 %v295
  %v640 = vunpack.c.l.b16 %v296
  %v641 = vunpack.c.h.b16 %v296
  %v642 = vunpack.c.l.b16 %v297
  %v643 = vunpack.c.h.b16 %v297
  %v644 = vunpack.c.l.b16 %v298
  %v645 = vunpack.c.h.b16 %v298
  %v646 = vunpack.c.l.b16 %v299
  %v647 = vunpack.c.h.b16 %v299
  %v648 = vunpack.c.l.b16 %v300
  %v649 = vunpack.c.h.b16 %v300
  %v650 = vunpack.c.l.b16 %v301
  %v651 = vunpack.c.h.b16 %v301
  %v652 = vunpack.c.l.b16 %v302
  %v653 = vunpack.c.h.b16 %v302
  %v654 = vunpack.c.l.b16 %v303
  %v655 = vunpack.c.h.b16 %v303
  %v656 = vunpack.c.l.b16 %v304
  %v657 = vunpack.c.h.b16 %v304
  %v658 = vunpack.c.l.b16 %v305
  %v659 = vunpack.c.h.b16 %v305
  %v660 = vunpack.c.l.b16 %v306
  %v661 = vunpack.c.h.b16 %v306
  %v662 = vunpack.c.l.b16 %v307
  %v663 = vunpack.c.h.b16 %v307
  %v664 = vunpack.c.l.b16 %v308
  %v665 = vunpack.c.h.b16 %v308
  %v666 = vunpack.c.l.b16 %v309
  %v667 = vunpack.c.h.b16 %v309
  %v668 = vunpack.c.l.b16 %v310
  %v669 = vunpack.c.h.b16 %v310
  %v670 = vunpack.c.l.b16 %v311
  %v671 = vunpack.c.h.b16 %v311
  %v672 = vunpack.c.l.b16 %v312
  %v673 = vunpack.c.h.b16 %v312
  %v674 = vunpack.c.l.b16 %v313
  %v675 = vunpack.c.h.b16 %v313
  %v676 = vunpack.c.l.b16 %v314
  %v677 = vunpack.c.h.b16 %v314
  %v678 = vunpack.c.l.b16 %v315
  %v679 = vunpack.c.h.b16 %v315
  %v680 = vunpack.c.l.b16 %v316
  %v681 = vunpack.c.h.b16 %v316
  %v682 = vunpack.c.l.b16 %v317
  %v683 = vunpack.c.h.b16 %v317
  %v684 = vunpack.c.l.b16 %v318
  %v685 = vunpack.c.h.b16 %v318
  %v686 = vunpack.c.l.b16 %v319
  %v687 = vunpack.c.h.b16 %v319
  %v688 = vunpack.c.l.b16 %v320
  %v689 = vunpack.c.h.b16 %v320
  %v690 = vunpack.c.l.b16 %v321
  %v691 = vunpack.c.h.b16 %v321
  %v692 = vunpack.c.l.b16 %v322
  %v693 = vunpack.c.h.b16 %v322
  %v694 = vpack.c.b16 %v634, %v630
  %v695 = vpack.c.b16 %v635, %v631
  %v696 = vpack.c.b16 %v636, %v632
  %v697 = vpack.c.b16 %v637, %v633
  %v698 = vpack.c.b16 %v642, %v638
  %v699 = vpack.c.b16 %v643, %v639
  %v700 = vpack.c.b16 %v644, %v640
  %v701 = vpack.c.b16 %v645, %v641
  %v702 = vpack.c.b16 %v650, %v646
  %v703 = vpack.c.b16 %v651, %v647
  %v704 = vpack.c.b16 %v652, %v648
  %v705 = vpack.c.b16 %v653, %v649
  %v706 = vpack.c.b16 %v658, %v654
  %v707 = vpack.c.b16 %v659, %v655
  %v708 = vpack.c.b16 %v660, %v656
  %v709 = vpack.c.b16 %v661, %v657
  %v710 = vpack.c.b16 %v666, %v662
  %v711 = vpack.c.b16 %v667, %v663
  %v712 = vpack.c.b16 %v668, %v664
  %v713 = vpack.c.b16 %v669, %v665
  %v714 = vpack.c.b16 %v674, %v670
  %v715 = vpack.c.b16 %v675, %v671
  %v716 = vpack.c.b16 %v676, %v672
  %v717 = vpack.c.b16 %v677, %v673
  %v718 = vpack.c.b16 %v682, %v678
  %v719 = vpack.c.b16 %v683, %v679
  %v720 = vpack.c.b16 %v684, %v680
  %v721 = vpack.c.b16 %v685, %v681
  %v722 = vpack.c.b16 %v690, %v686
  %v723 = vpack.c.b16 %v691, %v687
  %v724 = vpack.c.b16 %v692, %v688
  %v725 = vpack.c.b16 %v693, %v689
  %758 = vmatprep.subr.bf16.mxu0 %v695
  %759 = vmatpush1.bf16.msra.mxu0 %v694
  %760 = vmatprep.subr.bf16.mxu0 %v699
  %761 = vmatpush1.bf16.msra.mxu0 %v698
  %762 = vmatprep.subr.bf16.mxu0 %v703
  %763 = vmatpush1.bf16.msra.mxu0 %v702
  %764 = vmatprep.subr.bf16.mxu0 %v707
  %765 = vmatpush1.bf16.msra.mxu0 %v706
  %766 = vmatprep.subr.bf16.mxu0 %v711
  %767 = vmatpush1.bf16.msra.mxu0 %v710
  %768 = vmatprep.subr.bf16.mxu0 %v715
  %769 = vmatpush1.bf16.msra.mxu0 %v714
  %770 = vmatprep.subr.bf16.mxu0 %v719
  %771 = vmatpush1.bf16.msra.mxu0 %v718
  %772 = vmatprep.subr.bf16.mxu0 %v723
  %773 = vmatpush1.bf16.msra.mxu0 %v722
  %774 = vmatprep.subr.bf16.mxu0 0
  %775 = vmatpush1.bf16.msra.mxu0 0
  %776 = vmatprep.subr.bf16.mxu0 0
  %777 = vmatpush1.bf16.msra.mxu0 0
  %778 = vmatprep.subr.bf16.mxu0 0
  %779 = vmatpush1.bf16.msra.mxu0 0
  %780 = vmatprep.subr.bf16.mxu0 0
  %781 = vmatpush1.bf16.msra.mxu0 0
  %782 = vmatprep.subr.bf16.mxu0 0
  %783 = vmatpush1.bf16.msra.mxu0 0
  %784 = vmatprep.subr.bf16.mxu0 0
  %785 = vmatpush1.bf16.msra.mxu0 0
  %786 = vmatprep.subr.bf16.mxu0 0
  %787 = vmatpush1.bf16.msra.mxu0 0
  %788 = vmatprep.subr.bf16.mxu0 0
  %789 = vmatpush1.bf16.msra.mxu0 0
  %790 = vmatprep.mubr.bf16.mxu0 0
  %791 = vmatmul.mubr.bf16.gmra.mrb[0].mxu0 %v290
  %v792 = vpop.f32.mrb[0].mxu0
  %v793 = vadd.f32 %v551, %v792
  %v794 = vpop.f32.mrb[0].mxu0
  %v795 = vadd.f32 %v553, %v794
  %v796 = vpop.f32.mrb[0].mxu0
  %v797 = vpop.f32.mrb[0].mxu0
  %798 = vdwg.mxu0
  %799 = vmatprep.subr.bf16.mxu0 %v697
  %800 = vmatpush1.bf16.msra.mxu0 %v696
  %801 = vmatprep.subr.bf16.mxu0 %v701
  %802 = vmatpush1.bf16.msra.mxu0 %v700
  %803 = vmatprep.subr.bf16.mxu0 %v705
  %804 = vmatpush1.bf16.msra.mxu0 %v704
  %805 = vmatprep.subr.bf16.mxu0 %v709
  %806 = vmatpush1.bf16.msra.mxu0 %v708
  %807 = vmatprep.subr.bf16.mxu0 %v713
  %808 = vmatpush1.bf16.msra.mxu0 %v712
  %809 = vmatprep.subr.bf16.mxu0 %v717
  %810 = vmatpush1.bf16.msra.mxu0 %v716
  %811 = vmatprep.subr.bf16.mxu0 %v721
  %812 = vmatpush1.bf16.msra.mxu0 %v720
  %813 = vmatprep.subr.bf16.mxu0 %v725
  %814 = vmatpush1.bf16.msra.mxu0 %v724
  %815 = vmatprep.subr.bf16.mxu0 0
  %816 = vmatpush1.bf16.msra.mxu0 0
  %817 = vmatprep.subr.bf16.mxu0 0
  %818 = vmatpush1.bf16.msra.mxu0 0
  %819 = vmatprep.subr.bf16.mxu0 0
  %820 = vmatpush1.bf16.msra.mxu0 0
  %821 = vmatprep.subr.bf16.mxu0 0
  %822 = vmatpush1.bf16.msra.mxu0 0
  %823 = vmatprep.subr.bf16.mxu0 0
  %824 = vmatpush1.bf16.msra.mxu0 0
  %825 = vmatprep.subr.bf16.mxu0 0
  %826 = vmatpush1.bf16.msra.mxu0 0
  %827 = vmatprep.subr.bf16.mxu0 0
  %828 = vmatpush1.bf16.msra.mxu0 0
  %829 = vmatprep.subr.bf16.mxu0 0
  %830 = vmatpush1.bf16.msra.mxu0 0
  %831 = vmatprep.mubr.bf16.mxu0 0
  %832 = vmatmul.mubr.bf16.gmra.mrb[0].mxu0 %v290
  %v833 = vpop.f32.mrb[0].mxu0
  %v834 = vadd.f32 %v592, %v833
  %v835 = vpop.f32.mrb[0].mxu0
  %v836 = vadd.f32 %v594, %v835
  %v837 = vpop.f32.mrb[0].mxu0
  %v838 = vpop.f32.mrb[0].mxu0
  %839 = vdwg.mxu0
  %v840 = vld [vmem:[%s8] sm:$0xf]
  %v842 = vlaneseq
  %v843 = vshrl.u32 %v842, 7
  %v844 = vsub.s32 0, %v843
  %v845 = vrot.slane %v840, %v844
  %v846 = vlaneseq
  %v847 = vshrl.u32 %v846, 7
  %v848 = vsub.s32 1, %v847
  %v849 = vrot.slane %v840, %v848
  %v850 = vlaneseq
  %v851 = vshrl.u32 %v850, 7
  %v852 = vsub.s32 2, %v851
  %v853 = vrot.slane %v840, %v852
  %v854 = vlaneseq
  %v855 = vshrl.u32 %v854, 7
  %v856 = vsub.s32 3, %v855
  %v857 = vrot.slane %v840, %v856
  %v862 = vadd.f32 %v793, %v845
  %v863 = vadd.f32 %v795, %v849
  %v864 = vadd.f32 %v834, %v853
  %v865 = vadd.f32 %v836, %v857
  %v866 = vmax.f32 %v862, 0.0
  %v867 = vmax.f32 %v863, 0.0
  %v868 = vmax.f32 %v864, 0.0
  %v869 = vmax.f32 %v865, 0.0
  %v870 = vpack.c.bf16 %v866, %v866
  %v871 = vpack.c.bf16 %v867, %v867
  %v872 = vpack.c.bf16 %v868, %v868
  %v873 = vpack.c.bf16 %v869, %v869
  %v874 = vld [vmem:[%s9] sm:$0xf]
  %v875 = vld [vmem:[%s9 + $0x4] sm:$0xf]
  %v876 = vld [vmem:[%s9 + $0x8] sm:$0xf]
  %v877 = vld [vmem:[%s9 + $0xc] sm:$0xf]
  %v878 = vld [vmem:[%s9 + $0x10] sm:$0xf]
  %v879 = vld [vmem:[%s9 + $0x14] sm:$0xf]
  %v880 = vld [vmem:[%s9 + $0x18] sm:$0xf]
  %v881 = vld [vmem:[%s9 + $0x1c] sm:$0xf]
  %v882 = vld [vmem:[%s9 + $0x20] sm:$0xf]
  %v883 = vld [vmem:[%s9 + $0x24] sm:$0xf]
  %v884 = vld [vmem:[%s9 + $0x28] sm:$0xf]
  %v885 = vld [vmem:[%s9 + $0x2c] sm:$0xf]
  %v886 = vld [vmem:[%s9 + $0x30] sm:$0xf]
  %v887 = vld [vmem:[%s9 + $0x34] sm:$0xf]
  %v888 = vld [vmem:[%s9 + $0x38] sm:$0xf]
  %v889 = vld [vmem:[%s9 + $0x3c] sm:$0xf]
  %v890 = vld [vmem:[%s9 + $0x40] sm:$0xf]
  %v891 = vld [vmem:[%s9 + $0x44] sm:$0xf]
  %v892 = vld [vmem:[%s9 + $0x48] sm:$0xf]
  %v893 = vld [vmem:[%s9 + $0x4c] sm:$0xf]
  %v894 = vld [vmem:[%s9 + $0x50] sm:$0xf]
  %v895 = vld [vmem:[%s9 + $0x54] sm:$0xf]
  %v896 = vld [vmem:[%s9 + $0x58] sm:$0xf]
  %v897 = vld [vmem:[%s9 + $0x5c] sm:$0xf]
  %v898 = vld [vmem:[%s9 + $0x60] sm:$0xf]
  %v899 = vld [vmem:[%s9 + $0x64] sm:$0xf]
  %v900 = vld [vmem:[%s9 + $0x68] sm:$0xf]
  %v901 = vld [vmem:[%s9 + $0x6c] sm:$0xf]
  %v902 = vld [vmem:[%s9 + $0x70] sm:$0xf]
  %v903 = vld [vmem:[%s9 + $0x74] sm:$0xf]
  %v904 = vld [vmem:[%s9 + $0x78] sm:$0xf]
  %v905 = vld [vmem:[%s9 + $0x7c] sm:$0xf]
  %v906 = vld [vmem:[%s9 + $0x80] sm:$0xf]
  %v907 = vld [vmem:[%s9 + $0x84] sm:$0xf]
  %v908 = vld [vmem:[%s9 + $0x88] sm:$0xf]
  %v909 = vld [vmem:[%s9 + $0x8c] sm:$0xf]
  %v910 = vld [vmem:[%s9 + $0x90] sm:$0xf]
  %v911 = vld [vmem:[%s9 + $0x94] sm:$0xf]
  %v912 = vld [vmem:[%s9 + $0x98] sm:$0xf]
  %v913 = vld [vmem:[%s9 + $0x9c] sm:$0xf]
  %v914 = vld [vmem:[%s9 + $0xa0] sm:$0xf]
  %v915 = vld [vmem:[%s9 + $0xa4] sm:$0xf]
  %v916 = vld [vmem:[%s9 + $0xa8] sm:$0xf]
  %v917 = vld [vmem:[%s9 + $0xac] sm:$0xf]
  %v918 = vld [vmem:[%s9 + $0xb0] sm:$0xf]
  %v919 = vld [vmem:[%s9 + $0xb4] sm:$0xf]
  %v920 = vld [vmem:[%s9 + $0xb8] sm:$0xf]
  %v921 = vld [vmem:[%s9 + $0xbc] sm:$0xf]
  %v922 = vld [vmem:[%s9 + $0xc0] sm:$0xf]
  %v923 = vld [vmem:[%s9 + $0xc4] sm:$0xf]
  %v924 = vld [vmem:[%s9 + $0xc8] sm:$0xf]
  %v925 = vld [vmem:[%s9 + $0xcc] sm:$0xf]
  %v926 = vld [vmem:[%s9 + $0xd0] sm:$0xf]
  %v927 = vld [vmem:[%s9 + $0xd4] sm:$0xf]
  %v928 = vld [vmem:[%s9 + $0xd8] sm:$0xf]
  %v929 = vld [vmem:[%s9 + $0xdc] sm:$0xf]
  %v930 = vld [vmem:[%s9 + $0xe0] sm:$0xf]
  %v931 = vld [vmem:[%s9 + $0xe4] sm:$0xf]
  %v932 = vld [vmem:[%s9 + $0xe8] sm:$0xf]
  %v933 = vld [vmem:[%s9 + $0xec] sm:$0xf]
  %v934 = vld [vmem:[%s9 + $0xf0] sm:$0xf]
  %v935 = vld [vmem:[%s9 + $0xf4] sm:$0xf]
  %v936 = vld [vmem:[%s9 + $0xf8] sm:$0xf]
  %v937 = vld [vmem:[%s9 + $0xfc] sm:$0xf]
  %v938 = vld [vmem:[%s10] sm:$0x1]
  %v940 = vlaneseq
  %v941 = vshrl.u32 %v940, 7
  %v942 = vsub.s32 0, %v941
  %v943 = vrot.slane %v938, %v942
  %v1009 = vunpack.c.l.b16 %v874
  %v1010 = vunpack.c.l.b16 %v875
  %v1011 = vunpack.c.l.b16 %v876
  %v1012 = vunpack.c.l.b16 %v877
  %v1013 = vunpack.c.l.b16 %v878
  %v1014 = vunpack.c.l.b16 %v879
  %v1015 = vunpack.c.l.b16 %v880
  %v1016 = vunpack.c.l.b16 %v881
  %v1017 = vunpack.c.l.b16 %v882
  %v1018 = vunpack.c.l.b16 %v883
  %v1019 = vunpack.c.l.b16 %v884
  %v1020 = vunpack.c.l.b16 %v885
  %v1021 = vunpack.c.l.b16 %v886
  %v1022 = vunpack.c.l.b16 %v887
  %v1023 = vunpack.c.l.b16 %v888
  %v1024 = vunpack.c.l.b16 %v889
  %v1025 = vunpack.c.l.b16 %v890
  %v1026 = vunpack.c.l.b16 %v891
  %v1027 = vunpack.c.l.b16 %v892
  %v1028 = vunpack.c.l.b16 %v893
  %v1029 = vunpack.c.l.b16 %v894
  %v1030 = vunpack.c.l.b16 %v895
  %v1031 = vunpack.c.l.b16 %v896
  %v1032 = vunpack.c.l.b16 %v897
  %v1033 = vunpack.c.l.b16 %v898
  %v1034 = vunpack.c.l.b16 %v899
  %v1035 = vunpack.c.l.b16 %v900
  %v1036 = vunpack.c.l.b16 %v901
  %v1037 = vunpack.c.l.b16 %v902
  %v1038 = vunpack.c.l.b16 %v903
  %v1039 = vunpack.c.l.b16 %v904
  %v1040 = vunpack.c.l.b16 %v905
  %v1041 = vunpack.c.l.b16 %v906
  %v1042 = vunpack.c.l.b16 %v907
  %v1043 = vunpack.c.l.b16 %v908
  %v1044 = vunpack.c.l.b16 %v909
  %v1045 = vunpack.c.l.b16 %v910
  %v1046 = vunpack.c.l.b16 %v911
  %v1047 = vunpack.c.l.b16 %v912
  %v1048 = vunpack.c.l.b16 %v913
  %v1049 = vunpack.c.l.b16 %v914
  %v1050 = vunpack.c.l.b16 %v915
  %v1051 = vunpack.c.l.b16 %v916
  %v1052 = vunpack.c.l.b16 %v917
  %v1053 = vunpack.c.l.b16 %v918
  %v1054 = vunpack.c.l.b16 %v919
  %v1055 = vunpack.c.l.b16 %v920
  %v1056 = vunpack.c.l.b16 %v921
  %v1057 = vunpack.c.l.b16 %v922
  %v1058 = vunpack.c.l.b16 %v923
  %v1059 = vunpack.c.l.b16 %v924
  %v1060 = vunpack.c.l.b16 %v925
  %v1061 = vunpack.c.l.b16 %v926
  %v1062 = vunpack.c.l.b16 %v927
  %v1063 = vunpack.c.l.b16 %v928
  %v1064 = vunpack.c.l.b16 %v929
  %v1065 = vunpack.c.l.b16 %v930
  %v1066 = vunpack.c.l.b16 %v931
  %v1067 = vunpack.c.l.b16 %v932
  %v1068 = vunpack.c.l.b16 %v933
  %v1069 = vunpack.c.l.b16 %v934
  %v1070 = vunpack.c.l.b16 %v935
  %v1071 = vunpack.c.l.b16 %v936
  %v1072 = vunpack.c.l.b16 %v937
  %v1073 = vpack.c.b16 %v1010, %v1009
  %v1074 = vpack.c.b16 %v1012, %v1011
  %v1075 = vpack.c.b16 %v1014, %v1013
  %v1076 = vpack.c.b16 %v1016, %v1015
  %v1077 = vpack.c.b16 %v1018, %v1017
  %v1078 = vpack.c.b16 %v1020, %v1019
  %v1079 = vpack.c.b16 %v1022, %v1021
  %v1080 = vpack.c.b16 %v1024, %v1023
  %v1081 = vpack.c.b16 %v1026, %v1025
  %v1082 = vpack.c.b16 %v1028, %v1027
  %v1083 = vpack.c.b16 %v1030, %v1029
  %v1084 = vpack.c.b16 %v1032, %v1031
  %v1085 = vpack.c.b16 %v1034, %v1033
  %v1086 = vpack.c.b16 %v1036, %v1035
  %v1087 = vpack.c.b16 %v1038, %v1037
  %v1088 = vpack.c.b16 %v1040, %v1039
  %v1089 = vpack.c.b16 %v1042, %v1041
  %v1090 = vpack.c.b16 %v1044, %v1043
  %v1091 = vpack.c.b16 %v1046, %v1045
  %v1092 = vpack.c.b16 %v1048, %v1047
  %v1093 = vpack.c.b16 %v1050, %v1049
  %v1094 = vpack.c.b16 %v1052, %v1051
  %v1095 = vpack.c.b16 %v1054, %v1053
  %v1096 = vpack.c.b16 %v1056, %v1055
  %v1097 = vpack.c.b16 %v1058, %v1057
  %v1098 = vpack.c.b16 %v1060, %v1059
  %v1099 = vpack.c.b16 %v1062, %v1061
  %v1100 = vpack.c.b16 %v1064, %v1063
  %v1101 = vpack.c.b16 %v1066, %v1065
  %v1102 = vpack.c.b16 %v1068, %v1067
  %v1103 = vpack.c.b16 %v1070, %v1069
  %v1104 = vpack.c.b16 %v1072, %v1071
  %1137 = vmatprep.subr.bf16.mxu0 0
  %1138 = vmatpush1.bf16.msra.mxu0 %v1073
  %1139 = vmatprep.subr.bf16.mxu0 0
  %1140 = vmatpush1.bf16.msra.mxu0 %v1074
  %1141 = vmatprep.subr.bf16.mxu0 0
  %1142 = vmatpush1.bf16.msra.mxu0 %v1075
  %1143 = vmatprep.subr.bf16.mxu0 0
  %1144 = vmatpush1.bf16.msra.mxu0 %v1076
  %1145 = vmatprep.subr.bf16.mxu0 0
  %1146 = vmatpush1.bf16.msra.mxu0 %v1077
  %1147 = vmatprep.subr.bf16.mxu0 0
  %1148 = vmatpush1.bf16.msra.mxu0 %v1078
  %1149 = vmatprep.subr.bf16.mxu0 0
  %1150 = vmatpush1.bf16.msra.mxu0 %v1079
  %1151 = vmatprep.subr.bf16.mxu0 0
  %1152 = vmatpush1.bf16.msra.mxu0 %v1080
  %1153 = vmatprep.subr.bf16.mxu0 0
  %1154 = vmatpush1.bf16.msra.mxu0 %v1081
  %1155 = vmatprep.subr.bf16.mxu0 0
  %1156 = vmatpush1.bf16.msra.mxu0 %v1082
  %1157 = vmatprep.subr.bf16.mxu0 0
  %1158 = vmatpush1.bf16.msra.mxu0 %v1083
  %1159 = vmatprep.subr.bf16.mxu0 0
  %1160 = vmatpush1.bf16.msra.mxu0 %v1084
  %1161 = vmatprep.subr.bf16.mxu0 0
  %1162 = vmatpush1.bf16.msra.mxu0 %v1085
  %1163 = vmatprep.subr.bf16.mxu0 0
  %1164 = vmatpush1.bf16.msra.mxu0 %v1086
  %1165 = vmatprep.subr.bf16.mxu0 0
  %1166 = vmatpush1.bf16.msra.mxu0 %v1087
  %1167 = vmatprep.subr.bf16.mxu0 0
  %1168 = vmatpush1.bf16.msra.mxu0 %v1088
  %1169 = vmatprep.mubr.bf16.mxu0 %v871
  %1170 = vmatmul.mubr.bf16.gmra.mrb[0].mxu0 %v870
  %v1171 = vpop.f32.mrb[0].mxu0
  %v1172 = vadd.f32 %v943, %v1171
  %v1173 = vpop.f32.mrb[0].mxu0
  %v1174 = vpop.f32.mrb[0].mxu0
  %v1175 = vpop.f32.mrb[0].mxu0
  %1176 = vdwg.mxu0
  %1177 = vmatprep.subr.bf16.mxu0 0
  %1178 = vmatpush1.bf16.msra.mxu0 %v1089
  %1179 = vmatprep.subr.bf16.mxu0 0
  %1180 = vmatpush1.bf16.msra.mxu0 %v1090
  %1181 = vmatprep.subr.bf16.mxu0 0
  %1182 = vmatpush1.bf16.msra.mxu0 %v1091
  %1183 = vmatprep.subr.bf16.mxu0 0
  %1184 = vmatpush1.bf16.msra.mxu0 %v1092
  %1185 = vmatprep.subr.bf16.mxu0 0
  %1186 = vmatpush1.bf16.msra.mxu0 %v1093
  %1187 = vmatprep.subr.bf16.mxu0 0
  %1188 = vmatpush1.bf16.msra.mxu0 %v1094
  %1189 = vmatprep.subr.bf16.mxu0 0
  %1190 = vmatpush1.bf16.msra.mxu0 %v1095
  %1191 = vmatprep.subr.bf16.mxu0 0
  %1192 = vmatpush1.bf16.msra.mxu0 %v1096
  %1193 = vmatprep.subr.bf16.mxu0 0
  %1194 = vmatpush1.bf16.msra.mxu0 %v1097
  %1195 = vmatprep.subr.bf16.mxu0 0
  %1196 = vmatpush1.bf16.msra.mxu0 %v1098
  %1197 = vmatprep.subr.bf16.mxu0 0
  %1198 = vmatpush1.bf16.msra.mxu0 %v1099
  %1199 = vmatprep.subr.bf16.mxu0 0
  %1200 = vmatpush1.bf16.msra.mxu0 %v1100
  %1201 = vmatprep.subr.bf16.mxu0 0
  %1202 = vmatpush1.bf16.msra.mxu0 %v1101
  %1203 = vmatprep.subr.bf16.mxu0 0
  %1204 = vmatpush1.bf16.msra.mxu0 %v1102
  %1205 = vmatprep.subr.bf16.mxu0 0
  %1206 = vmatpush1.bf16.msra.mxu0 %v1103
  %1207 = vmatprep.subr.bf16.mxu0 0
  %1208 = vmatpush1.bf16.msra.mxu0 %v1104
  %1209 = vmatprep.mubr.bf16.mxu0 %v873
  %1210 = vmatmul.mubr.bf16.gmra.mrb[0].mxu0 %v872
  %v1211 = vpop.f32.mrb[0].mxu0
  %v1212 = vadd.f32 %v1172, %v1211
  %v1213 = vpop.f32.mrb[0].mxu0
  %v1214 = vpop.f32.mrb[0].mxu0
  %v1215 = vpop.f32.mrb[0].mxu0
  %1216 = vdwg.mxu0
  %1217 = vst [vmem:[%s11] sm:$0xff] %v1212
  // Predicated region
  $region46: #{combined_efficientnet_forward.3} parent=0 // pred_check
    _
  $region47: #{combined_efficientnet_forward.3} parent=0 // pred_check_branch
    %1219 = sbr.rel (0) target = $region49
  $region48: #{combined_efficientnet_forward.3} parent=0 // pred_region
    _
  $region49: #{combined_efficientnet_forward.3} parent=0 // pred_fallthru
    _
  // Predicated region
  $region50: #{combined_efficientnet_forward.3} parent=0 // pred_check
    _
  $region51: #{combined_efficientnet_forward.3} parent=0 // pred_check_branch
    %1221 = sbr.rel (0) target = $region53
  $region52: #{combined_efficientnet_forward.3} parent=0 // pred_region
    _
  $region53: #{combined_efficientnet_forward.3} parent=0 // pred_fallthru
    _

</llo_original>
